<compile_context>
chip_gen: v5e
topology: v5e:2x2
jax: 0.10.0
libtpu: 0.0.40
codegen_flags: <defaults>
</compile_context>

<pallas_src>
import jax
import jax.numpy as jnp
from jax.experimental import pallas as pl
from jax.experimental.pallas import tpu as pltpu

D_IN = 28 * 28      # 784 (contraction dim, NOT padded)
H1, H2 = 128, 256
D_OUT = 10
N_PAD = 128         # output padded 10 -> 128 for lane-dense, unmasked stores


def _round_up(a, m):
    return (a + m - 1) // m * m


def _cdiv(a, b):
    return -(-a // b)


def _pick_tile_b(B, max_tile_b):
    """Batch tile: multiple of 128, capped at max_tile_b, chosen so mid-size
    batches are not grossly over-padded (e.g. B=600 -> tile 640, not 2048)."""
    max_tile_b = max(128, _round_up(max_tile_b, 128))
    if B <= max_tile_b:
        return _round_up(max(B, 1), 128)
    n_tiles = _cdiv(B, max_tile_b)
    return _round_up(_cdiv(B, n_tiles), 128)


def _mlp_kernel(x_ref, w1_ref, b1_ref, w2_ref, b2_ref, w3_ref, b3_ref, o_ref):
    # x_ref: (TILE_B, 784) in the caller's dtype (f32 or bf16); cast to bf16
    # here so the MXU sees bf16 operands with f32 accumulation.
    x = x_ref[...].astype(jnp.bfloat16)
    h1 = jnp.dot(x, w1_ref[...], preferred_element_type=jnp.float32)
    h1 = h1 + b1_ref[...]                                   # f32 epilogue
    h2 = jnp.dot(h1.astype(jnp.bfloat16), w2_ref[...],
                 preferred_element_type=jnp.float32)
    h2 = h2 + b2_ref[...]
    h3 = jnp.dot(h2.astype(jnp.bfloat16), w3_ref[...],
                 preferred_element_type=jnp.float32)
    h3 = h3 + b3_ref[...]
    o_ref[...] = h3.astype(o_ref.dtype)                     # bf16, (TILE_B, 128)


def fully_connected_forward(x, params, *, max_tile_b=2048):
    """x: (B, 784) float32 or bfloat16. params: w1,b1,w2,b2,w3,b3 with w stored
    as (in, out) and b as (1, out)."""
    B = x.shape[0]
    tile_b = _pick_tile_b(B, max_tile_b)
    Bp = _round_up(B, tile_b)

    # Only the batch dim is padded (no dtype/lane re-materialization of x).
    x_p = x if Bp == B else jnp.pad(x, ((0, Bp - B), (0, 0)))

    # Weight prep (tiny, grid-invariant; ideally done once by the caller).
    w1 = params["w1"].astype(jnp.bfloat16)                          # (784, 128)
    w2 = params["w2"].astype(jnp.bfloat16)                          # (128, 256)
    w3 = jnp.zeros((H2, N_PAD), jnp.bfloat16).at[:, :D_OUT].set(
        params["w3"].astype(jnp.bfloat16))                          # (256, 128)
    b1 = params["b1"].astype(jnp.float32).reshape(1, H1)
    b2 = params["b2"].astype(jnp.float32).reshape(1, H2)
    b3 = jnp.zeros((1, N_PAD), jnp.float32).at[:, :D_OUT].set(
        params["b3"].astype(jnp.float32).reshape(1, D_OUT))

    grid = (Bp // tile_b,)

    flops = 2 * Bp * (D_IN * H1 + H1 * H2 + H2 * N_PAD)
    bytes_accessed = (
        x_p.size * x_p.dtype.itemsize
        + (w1.size + w2.size + w3.size) * 2
        + (b1.size + b2.size + b3.size) * 4
        + Bp * N_PAD * 2
    )

    def build_call(single_buffer_weights):
        def resident(shape):
            # Same block every grid step -> stays VMEM-resident; request a
            # single buffer (no pointless double-buffering of constants).
            idx_map = lambda i: (0,) * len(shape)
            if single_buffer_weights:
                return pl.BlockSpec(shape, idx_map,
                                    pipeline_mode=pl.Buffered(1))
            return pl.BlockSpec(shape, idx_map)

        return pl.pallas_call(
            _mlp_kernel,
            out_shape=jax.ShapeDtypeStruct((Bp, N_PAD), jnp.bfloat16),
            grid=grid,
            in_specs=[
                pl.BlockSpec((tile_b, D_IN), lambda i: (i, 0)),  # streamed x
                resident(w1.shape), resident(b1.shape),
                resident(w2.shape), resident(b2.shape),
                resident(w3.shape), resident(b3.shape),
            ],
            out_specs=pl.BlockSpec((tile_b, N_PAD), lambda i: (i, 0)),
            compiler_params=pltpu.CompilerParams(
                dimension_semantics=("parallel",),       # megacore on v7x
                vmem_limit_bytes=48 * 1024 * 1024,       # fits v5e/v6e/v7x
            ),
            cost_estimate=pl.CostEstimate(
                flops=flops, transcendentals=0, bytes_accessed=bytes_accessed),
        )

    args = (x_p, w1, b1, w2, b2, w3, b3)
    try:
        out = build_call(True)(*args)
    except Exception:
        # Fallback if this JAX build rejects Buffered(1) single-buffering.
        out = build_call(False)(*args)

    # Drop batch padding and the 10->128 output padding; return f32 like the
    # PyTorch module. (The slice is over a bf16 slab, so this extra pass is
    # half the size it used to be.)
    return out[:B, :D_OUT].astype(jnp.float32)


def init_params(key):
    """Deterministic init mimicking PyTorch nn.Linear default
    (U[-1/sqrt(fan_in), 1/sqrt(fan_in)]); weights stored transposed (in, out)."""
    dims = [(D_IN, H1), (H1, H2), (H2, D_OUT)]
    params = {}
    for i, (fan_in, fan_out) in enumerate(dims, start=1):
        key, kw, kb = jax.random.split(key, 3)
        bound = 1.0 / (fan_in ** 0.5)
        params[f"w{i}"] = jax.random.uniform(
            kw, (fan_in, fan_out), jnp.float32, minval=-bound, maxval=bound)
        params[f"b{i}"] = jax.random.uniform(
            kb, (1, fan_out), jnp.float32, minval=-bound, maxval=bound)
    return params


def reference_forward(x, params):
    h = x @ params["w1"] + params["b1"]
    h = h @ params["w2"] + params["b2"]
    return h @ params["w3"] + params["b3"]


if __name__ == "__main__":
    key = jax.random.PRNGKey(0)
    key, kx = jax.random.split(key)
    B = 8
    x = jax.random.normal(kx, (B, D_IN), jnp.float32)
    params = init_params(key)

    out = fully_connected_forward(x, params)
    out = jax.block_until_ready(out)

    ref = reference_forward(x, params)
    assert out.shape == (B, D_OUT), out.shape
    # bf16 operands / bf16 output with f32 MXU accumulation -> ~1e-2 budget.
    assert jnp.allclose(out, ref, atol=3e-2, rtol=3e-2), "mismatch vs reference"
    print("KERNEL_OK")
</pallas_src>

<mosaic_0001>
module attributes {stable_mosaic.version = 11 : i64} {
  func.func @_mlp_kernel(%arg0: i32, %arg1: memref<128x784xf32, #tpu.memory_space<vmem>>, %arg2: memref<784x128xbf16, #tpu.memory_space<vmem>>, %arg3: memref<1x128xf32, #tpu.memory_space<vmem>>, %arg4: memref<128x256xbf16, #tpu.memory_space<vmem>>, %arg5: memref<1x256xf32, #tpu.memory_space<vmem>>, %arg6: memref<256x128xbf16, #tpu.memory_space<vmem>>, %arg7: memref<1x128xf32, #tpu.memory_space<vmem>>, %arg8: memref<128x128xbf16, #tpu.memory_space<vmem>>) attributes {dimension_semantics = [#tpu.dimension_semantics<parallel>], iteration_bounds = array<i64: 1>, scalar_prefetch = 0 : i64, scratch_operands = 0 : i64, tpu.core_type = #tpu.core_type<tc>, window_params = [{transform_indices = @transform_0, window_bounds = array<i64: 128, 784>}, {pipeline_mode = #tpu.pipeline_mode<synchronous>, transform_indices = @transform_1, window_bounds = array<i64: 784, 128>}, {pipeline_mode = #tpu.pipeline_mode<synchronous>, transform_indices = @transform_2, window_bounds = array<i64: 1, 128>}, {pipeline_mode = #tpu.pipeline_mode<synchronous>, transform_indices = @transform_3, window_bounds = array<i64: 128, 256>}, {pipeline_mode = #tpu.pipeline_mode<synchronous>, transform_indices = @transform_4, window_bounds = array<i64: 1, 256>}, {pipeline_mode = #tpu.pipeline_mode<synchronous>, transform_indices = @transform_5, window_bounds = array<i64: 256, 128>}, {pipeline_mode = #tpu.pipeline_mode<synchronous>, transform_indices = @transform_6, window_bounds = array<i64: 1, 128>}, {transform_indices = @transform_7, window_bounds = array<i64: 128, 128>}]} {
    %c0 = arith.constant 0 : index
    %c0_0 = arith.constant 0 : index
    %0 = vector.load %arg1[%c0, %c0_0] : memref<128x784xf32, #tpu.memory_space<vmem>>, vector<128x784xf32>
    %1 = arith.truncf %0 : vector<128x784xf32> to vector<128x784xbf16>
    %c0_1 = arith.constant 0 : index
    %c0_2 = arith.constant 0 : index
    %2 = vector.load %arg2[%c0_1, %c0_2] : memref<784x128xbf16, #tpu.memory_space<vmem>>, vector<784x128xbf16>
    %cst = arith.constant dense<0.000000e+00> : vector<128x128xf32>
    %3 = tpu.matmul %1, %2, %cst {dimension_numbers = #tpu.dot_dimension_numbers<[1], [0], [0], [1], [0, 0, 1, 1], [], []>} : vector<128x784xbf16>, vector<784x128xbf16>, vector<128x128xf32> -> vector<128x128xf32>
    %c0_3 = arith.constant 0 : index
    %c0_4 = arith.constant 0 : index
    %4 = vector.load %arg3[%c0_3, %c0_4] : memref<1x128xf32, #tpu.memory_space<vmem>>, vector<1x128xf32>
    %5 = vector.broadcast %4 : vector<1x128xf32> to vector<128x128xf32>
    %6 = arith.addf %3, %5 : vector<128x128xf32>
    %7 = arith.truncf %6 : vector<128x128xf32> to vector<128x128xbf16>
    %c0_5 = arith.constant 0 : index
    %c0_6 = arith.constant 0 : index
    %8 = vector.load %arg4[%c0_5, %c0_6] : memref<128x256xbf16, #tpu.memory_space<vmem>>, vector<128x256xbf16>
    %cst_7 = arith.constant dense<0.000000e+00> : vector<128x256xf32>
    %9 = tpu.matmul %7, %8, %cst_7 {dimension_numbers = #tpu.dot_dimension_numbers<[1], [0], [0], [1], [0, 0, 1, 1], [], []>} : vector<128x128xbf16>, vector<128x256xbf16>, vector<128x256xf32> -> vector<128x256xf32>
    %c0_8 = arith.constant 0 : index
    %c0_9 = arith.constant 0 : index
    %10 = vector.load %arg5[%c0_8, %c0_9] : memref<1x256xf32, #tpu.memory_space<vmem>>, vector<1x256xf32>
    %11 = vector.broadcast %10 : vector<1x256xf32> to vector<128x256xf32>
    %12 = arith.addf %9, %11 : vector<128x256xf32>
    %13 = arith.truncf %12 : vector<128x256xf32> to vector<128x256xbf16>
    %c0_10 = arith.constant 0 : index
    %c0_11 = arith.constant 0 : index
    %14 = vector.load %arg6[%c0_10, %c0_11] : memref<256x128xbf16, #tpu.memory_space<vmem>>, vector<256x128xbf16>
    %cst_12 = arith.constant dense<0.000000e+00> : vector<128x128xf32>
    %15 = tpu.matmul %13, %14, %cst_12 {dimension_numbers = #tpu.dot_dimension_numbers<[1], [0], [0], [1], [0, 0, 1, 1], [], []>} : vector<128x256xbf16>, vector<256x128xbf16>, vector<128x128xf32> -> vector<128x128xf32>
    %c0_13 = arith.constant 0 : index
    %c0_14 = arith.constant 0 : index
    %16 = vector.load %arg7[%c0_13, %c0_14] : memref<1x128xf32, #tpu.memory_space<vmem>>, vector<1x128xf32>
    %17 = vector.broadcast %16 : vector<1x128xf32> to vector<128x128xf32>
    %18 = arith.addf %15, %17 : vector<128x128xf32>
    %19 = arith.truncf %18 : vector<128x128xf32> to vector<128x128xbf16>
    %c0_15 = arith.constant 0 : index
    %c0_16 = arith.constant 0 : index
    %20 = vector.load %arg8[%c0_15, %c0_16] : memref<128x128xbf16, #tpu.memory_space<vmem>>, vector<128x128xbf16>
    tpu.vector_store %arg8[%c0_15, %c0_16], %19 {strides = array<i32>} : memref<128x128xbf16, #tpu.memory_space<vmem>>, vector<128x128xbf16>,
    return
  }
  func.func @transform_0(%arg0: i32) -> (i32, i32) {
    %c0_i32 = arith.constant 0 : i32
    %c0_i32_0 = arith.constant 0 : i32
    return %arg0, %c0_i32 : i32, i32
  }
  func.func @transform_1(%arg0: i32) -> (i32, i32) {
    %c0_i32 = arith.constant 0 : i32
    %c0_i32_0 = arith.constant 0 : i32
    %c0_i32_1 = arith.constant 0 : i32
    return %c0_i32, %c0_i32_0 : i32, i32
  }
  func.func @transform_2(%arg0: i32) -> (i32, i32) {
    %c0_i32 = arith.constant 0 : i32
    %c0_i32_0 = arith.constant 0 : i32
    %c0_i32_1 = arith.constant 0 : i32
    return %c0_i32, %c0_i32_0 : i32, i32
  }
  func.func @transform_3(%arg0: i32) -> (i32, i32) {
    %c0_i32 = arith.constant 0 : i32
    %c0_i32_0 = arith.constant 0 : i32
    %c0_i32_1 = arith.constant 0 : i32
    return %c0_i32, %c0_i32_0 : i32, i32
  }
  func.func @transform_4(%arg0: i32) -> (i32, i32) {
    %c0_i32 = arith.constant 0 : i32
    %c0_i32_0 = arith.constant 0 : i32
    %c0_i32_1 = arith.constant 0 : i32
    return %c0_i32, %c0_i32_0 : i32, i32
  }
  func.func @transform_5(%arg0: i32) -> (i32, i32) {
    %c0_i32 = arith.constant 0 : i32
    %c0_i32_0 = arith.constant 0 : i32
    %c0_i32_1 = arith.constant 0 : i32
    return %c0_i32, %c0_i32_0 : i32, i32
  }
  func.func @transform_6(%arg0: i32) -> (i32, i32) {
    %c0_i32 = arith.constant 0 : i32
    %c0_i32_0 = arith.constant 0 : i32
    %c0_i32_1 = arith.constant 0 : i32
    return %c0_i32, %c0_i32_0 : i32, i32
  }
  func.func @transform_7(%arg0: i32) -> (i32, i32) {
    %c0_i32 = arith.constant 0 : i32
    %c0_i32_0 = arith.constant 0 : i32
    return %arg0, %c0_i32 : i32, i32
  }
}

module attributes {stable_mosaic.version = 11 : i64} {
  func.func @_mlp_kernel(%arg0: i32, %arg1: memref<128x784xf32, #tpu.memory_space<vmem>>, %arg2: memref<784x128xbf16, #tpu.memory_space<vmem>>, %arg3: memref<1x128xf32, #tpu.memory_space<vmem>>, %arg4: memref<128x256xbf16, #tpu.memory_space<vmem>>, %arg5: memref<1x256xf32, #tpu.memory_space<vmem>>, %arg6: memref<256x128xbf16, #tpu.memory_space<vmem>>, %arg7: memref<1x128xf32, #tpu.memory_space<vmem>>, %arg8: memref<128x128xbf16, #tpu.memory_space<vmem>>) attributes {dimension_semantics = [#tpu.dimension_semantics<parallel>], iteration_bounds = array<i64: 1>, scalar_prefetch = 0 : i64, scratch_operands = 0 : i64, tpu.core_type = #tpu.core_type<tc>, window_params = [{transform_indices = @transform_0, window_bounds = array<i64: 128, 784>}, {pipeline_mode = #tpu.pipeline_mode<synchronous>, transform_indices = @transform_1, window_bounds = array<i64: 784, 128>}, {pipeline_mode = #tpu.pipeline_mode<synchronous>, transform_indices = @transform_2, window_bounds = array<i64: 1, 128>}, {pipeline_mode = #tpu.pipeline_mode<synchronous>, transform_indices = @transform_3, window_bounds = array<i64: 128, 256>}, {pipeline_mode = #tpu.pipeline_mode<synchronous>, transform_indices = @transform_4, window_bounds = array<i64: 1, 256>}, {pipeline_mode = #tpu.pipeline_mode<synchronous>, transform_indices = @transform_5, window_bounds = array<i64: 256, 128>}, {pipeline_mode = #tpu.pipeline_mode<synchronous>, transform_indices = @transform_6, window_bounds = array<i64: 1, 128>}, {transform_indices = @transform_7, window_bounds = array<i64: 128, 128>}]} {
    %c0 = arith.constant 0 : index
    %c0_0 = arith.constant 0 : index
    %0 = vector.load %arg1[%c0, %c0_0] : memref<128x784xf32, #tpu.memory_space<vmem>>, vector<128x784xf32>
    %1 = arith.truncf %0 : vector<128x784xf32> to vector<128x784xbf16>
    %c0_1 = arith.constant 0 : index
    %c0_2 = arith.constant 0 : index
    %2 = vector.load %arg2[%c0_1, %c0_2] : memref<784x128xbf16, #tpu.memory_space<vmem>>, vector<784x128xbf16>
    %cst = arith.constant dense<0.000000e+00> : vector<128x128xf32>
    %3 = tpu.matmul %1, %2, %cst {dimension_numbers = #tpu.dot_dimension_numbers<[1], [0], [0], [1], [0, 0, 1, 1], [], []>} : vector<128x784xbf16>, vector<784x128xbf16>, vector<128x128xf32> -> vector<128x128xf32>
    %c0_3 = arith.constant 0 : index
    %c0_4 = arith.constant 0 : index
    %4 = vector.load %arg3[%c0_3, %c0_4] : memref<1x128xf32, #tpu.memory_space<vmem>>, vector<1x128xf32>
    %5 = vector.broadcast %4 : vector<1x128xf32> to vector<128x128xf32>
    %6 = arith.addf %3, %5 : vector<128x128xf32>
    %7 = arith.truncf %6 : vector<128x128xf32> to vector<128x128xbf16>
    %c0_5 = arith.constant 0 : index
    %c0_6 = arith.constant 0 : index
    %8 = vector.load %arg4[%c0_5, %c0_6] : memref<128x256xbf16, #tpu.memory_space<vmem>>, vector<128x256xbf16>
    %cst_7 = arith.constant dense<0.000000e+00> : vector<128x256xf32>
    %9 = tpu.matmul %7, %8, %cst_7 {dimension_numbers = #tpu.dot_dimension_numbers<[1], [0], [0], [1], [0, 0, 1, 1], [], []>} : vector<128x128xbf16>, vector<128x256xbf16>, vector<128x256xf32> -> vector<128x256xf32>
    %c0_8 = arith.constant 0 : index
    %c0_9 = arith.constant 0 : index
    %10 = vector.load %arg5[%c0_8, %c0_9] : memref<1x256xf32, #tpu.memory_space<vmem>>, vector<1x256xf32>
    %11 = vector.broadcast %10 : vector<1x256xf32> to vector<128x256xf32>
    %12 = arith.addf %9, %11 : vector<128x256xf32>
    %13 = arith.truncf %12 : vector<128x256xf32> to vector<128x256xbf16>
    %c0_10 = arith.constant 0 : index
    %c0_11 = arith.constant 0 : index
    %14 = vector.load %arg6[%c0_10, %c0_11] : memref<256x128xbf16, #tpu.memory_space<vmem>>, vector<256x128xbf16>
    %cst_12 = arith.constant dense<0.000000e+00> : vector<128x128xf32>
    %15 = tpu.matmul %13, %14, %cst_12 {dimension_numbers = #tpu.dot_dimension_numbers<[1], [0], [0], [1], [0, 0, 1, 1], [], []>} : vector<128x256xbf16>, vector<256x128xbf16>, vector<128x128xf32> -> vector<128x128xf32>
    %c0_13 = arith.constant 0 : index
    %c0_14 = arith.constant 0 : index
    %16 = vector.load %arg7[%c0_13, %c0_14] : memref<1x128xf32, #tpu.memory_space<vmem>>, vector<1x128xf32>
    %17 = vector.broadcast %16 : vector<1x128xf32> to vector<128x128xf32>
    %18 = arith.addf %15, %17 : vector<128x128xf32>
    %19 = arith.truncf %18 : vector<128x128xf32> to vector<128x128xbf16>
    %c0_15 = arith.constant 0 : index
    %c0_16 = arith.constant 0 : index
    %20 = vector.load %arg8[%c0_15, %c0_16] : memref<128x128xbf16, #tpu.memory_space<vmem>>, vector<128x128xbf16>
    tpu.vector_store %arg8[%c0_15, %c0_16], %19 {strides = array<i32>} : memref<128x128xbf16, #tpu.memory_space<vmem>>, vector<128x128xbf16>,
    return
  }
  func.func @transform_0(%arg0: i32) -> (i32, i32) {
    %c0_i32 = arith.constant 0 : i32
    %c0_i32_0 = arith.constant 0 : i32
    return %arg0, %c0_i32 : i32, i32
  }
  func.func @transform_1(%arg0: i32) -> (i32, i32) {
    %c0_i32 = arith.constant 0 : i32
    %c0_i32_0 = arith.constant 0 : i32
    %c0_i32_1 = arith.constant 0 : i32
    return %c0_i32, %c0_i32_0 : i32, i32
  }
  func.func @transform_2(%arg0: i32) -> (i32, i32) {
    %c0_i32 = arith.constant 0 : i32
    %c0_i32_0 = arith.constant 0 : i32
    %c0_i32_1 = arith.constant 0 : i32
    return %c0_i32, %c0_i32_0 : i32, i32
  }
  func.func @transform_3(%arg0: i32) -> (i32, i32) {
    %c0_i32 = arith.constant 0 : i32
    %c0_i32_0 = arith.constant 0 : i32
    %c0_i32_1 = arith.constant 0 : i32
    return %c0_i32, %c0_i32_0 : i32, i32
  }
  func.func @transform_4(%arg0: i32) -> (i32, i32) {
    %c0_i32 = arith.constant 0 : i32
    %c0_i32_0 = arith.constant 0 : i32
    %c0_i32_1 = arith.constant 0 : i32
    return %c0_i32, %c0_i32_0 : i32, i32
  }
  func.func @transform_5(%arg0: i32) -> (i32, i32) {
    %c0_i32 = arith.constant 0 : i32
    %c0_i32_0 = arith.constant 0 : i32
    %c0_i32_1 = arith.constant 0 : i32
    return %c0_i32, %c0_i32_0 : i32, i32
  }
  func.func @transform_6(%arg0: i32) -> (i32, i32) {
    %c0_i32 = arith.constant 0 : i32
    %c0_i32_0 = arith.constant 0 : i32
    %c0_i32_1 = arith.constant 0 : i32
    return %c0_i32, %c0_i32_0 : i32, i32
  }
  func.func @transform_7(%arg0: i32) -> (i32, i32) {
    %c0_i32 = arith.constant 0 : i32
    %c0_i32_0 = arith.constant 0 : i32
    return %arg0, %c0_i32 : i32, i32
  }
}

</mosaic_0001>

<llo_original>
// kernel: tpu_custom_call.1
$region0: #{tpu_custom_call.1}
  #allocation0 [shape = 'u32[]', space=smem, size = 0x4, offset = 0x4, fixed_abs, tag = 'smem constant byte address 0x4 - core index']
  #allocation1 [shape = 'u32[72,128]{1,0:T(1,128)}', space=vmem, size = 0x9000, scoped, tag = 'internal scratch']
  %s0 = inlined_call_operand.vmem [shape: f32[128,784], index: 0, kind: input, shape index: {}]
  %s1 = inlined_call_operand.vmem [shape: bf16[784,128], index: 1, kind: input, shape index: {}]
  %s2 = inlined_call_operand.vmem [shape: f32[1,128], index: 2, kind: input, shape index: {}]
  %s3 = inlined_call_operand.vmem [shape: bf16[128,256], index: 3, kind: input, shape index: {}]
  %s4 = inlined_call_operand.vmem [shape: f32[1,256], index: 4, kind: input, shape index: {}]
  %s5 = inlined_call_operand.vmem [shape: bf16[256,128], index: 5, kind: input, shape index: {}]
  %s6 = inlined_call_operand.vmem [shape: f32[1,128], index: 6, kind: input, shape index: {}]
  %s7 = inlined_call_operand.hbm [shape: bf16[128,128], index: 7, kind: output, shape index: {}]
  %s8 = sld [smem:[#allocation0]]
  $region38: #{tpu_custom_call.1} parent=0
    _
  %s10 = ssub.s32 1, %s8
  %s11 = scalar_select 0, %s10, %s8
  $region1: #{tpu_custom_call.1} parent=0
    #allocation2 [shape = 'u8[32768]{0}', space=vmem, size = 0x8000, scoped, tag = 'output window, operand 0, single buffered']
    #allocation3 [shape = 's32[1]{0}', space=sflag, size = 0x4, scoped, tag = 'scoped memory for tpu_custom_call.1']
    %12 = vsyncpa [#allocation3], 0
    // Predicated region
    $region2: #{tpu_custom_call.1} parent=1 // pred_check
      _
    $region3: #{tpu_custom_call.1} parent=1 // pred_check_branch
      %14 = sbr.rel (0) target = $region5
    $region4: #{tpu_custom_call.1} parent=1 // pred_region
      _
    $region5: #{tpu_custom_call.1} parent=1 // pred_fallthru
      _
    // Predicated region
    $region6: #{tpu_custom_call.1} parent=1 // pred_check
      _
    $region7: #{tpu_custom_call.1} parent=1 // pred_check_branch
      %16 = sbr.rel (0) target = $region9
    $region8: #{tpu_custom_call.1} parent=1 // pred_region
      _
    $region9: #{tpu_custom_call.1} parent=1 // pred_fallthru
      _
    // Predicated region
    $region10: #{tpu_custom_call.1} parent=1 // pred_check
      _
    $region11: #{tpu_custom_call.1} parent=1 // pred_check_branch
      %18 = sbr.rel (0) target = $region13
    $region12: #{tpu_custom_call.1} parent=1 // pred_region
      _
    $region13: #{tpu_custom_call.1} parent=1 // pred_fallthru
      _
    // Predicated region
    $region14: #{tpu_custom_call.1} parent=1 // pred_check
      _
    $region15: #{tpu_custom_call.1} parent=1 // pred_check_branch
      %20 = sbr.rel (0) target = $region17
    $region16: #{tpu_custom_call.1} parent=1 // pred_region
      _
    $region17: #{tpu_custom_call.1} parent=1 // pred_fallthru
      _
    // Predicated region
    $region18: #{tpu_custom_call.1} parent=1 // pred_check
      _
    $region19: #{tpu_custom_call.1} parent=1 // pred_check_branch
      %22 = sbr.rel (0) target = $region21
    $region20: #{tpu_custom_call.1} parent=1 // pred_region
      _
    $region21: #{tpu_custom_call.1} parent=1 // pred_fallthru
      _
    // Predicated region
    $region22: #{tpu_custom_call.1} parent=1 // pred_check
      _
    $region23: #{tpu_custom_call.1} parent=1 // pred_check_branch
      %24 = sbr.rel (0) target = $region25
    $region24: #{tpu_custom_call.1} parent=1 // pred_region
      _
    $region25: #{tpu_custom_call.1} parent=1 // pred_fallthru
      _
    // Predicated region
    $region26: #{tpu_custom_call.1} parent=1 // pred_check
      _
    $region27: #{tpu_custom_call.1} parent=1 // pred_check_branch
      %26 = sbr.rel (0) target = $region29
    $region28: #{tpu_custom_call.1} parent=1 // pred_region
      _
    $region29: #{tpu_custom_call.1} parent=1 // pred_fallthru
      _
    %v28 = vld [vmem:[%s0] sm:$0xff]
    %v29 = vld [vmem:[%s0 + $0x8] sm:$0xff]
    %v30 = vld [vmem:[%s0 + $0x10] sm:$0xff]
    %v31 = vld [vmem:[%s0 + $0x18] sm:$0xff]
    %v32 = vld [vmem:[%s0 + $0x20] sm:$0xff]
    %v33 = vld [vmem:[%s0 + $0x28] sm:$0xff]
    %v34 = vld [vmem:[%s0 + $0x30] sm:$0xff]
    %v35 = vld [vmem:[%s0 + $0x38] sm:$0xff]
    %v36 = vld [vmem:[%s0 + $0x40] sm:$0xff]
    %v37 = vld [vmem:[%s0 + $0x48] sm:$0xff]
    %v38 = vld [vmem:[%s0 + $0x50] sm:$0xff]
    %v39 = vld [vmem:[%s0 + $0x58] sm:$0xff]
    %v40 = vld [vmem:[%s0 + $0x60] sm:$0xff]
    %v41 = vld [vmem:[%s0 + $0x68] sm:$0xff]
    %v42 = vld [vmem:[%s0 + $0x70] sm:$0xff]
    %v43 = vld [vmem:[%s0 + $0x78] sm:$0xff]
    %v44 = vld [vmem:[%s0 + $0x80] sm:$0xff]
    %v45 = vld [vmem:[%s0 + $0x88] sm:$0xff]
    %v46 = vld [vmem:[%s0 + $0x90] sm:$0xff]
    %v47 = vld [vmem:[%s0 + $0x98] sm:$0xff]
    %v48 = vld [vmem:[%s0 + $0xa0] sm:$0xff]
    %v49 = vld [vmem:[%s0 + $0xa8] sm:$0xff]
    %v50 = vld [vmem:[%s0 + $0xb0] sm:$0xff]
    %v51 = vld [vmem:[%s0 + $0xb8] sm:$0xff]
    %v52 = vld [vmem:[%s0 + $0xc0] sm:$0xff]
    %v53 = vld [vmem:[%s0 + $0xc8] sm:$0xff]
    %v54 = vld [vmem:[%s0 + $0xd0] sm:$0xff]
    %v55 = vld [vmem:[%s0 + $0xd8] sm:$0xff]
    %v56 = vld [vmem:[%s0 + $0xe0] sm:$0xff]
    %v57 = vld [vmem:[%s0 + $0xe8] sm:$0xff]
    %v58 = vld [vmem:[%s0 + $0xf0] sm:$0xff]
    %v59 = vld [vmem:[%s0 + $0xf8] sm:$0xff]
    %v60 = vld [vmem:[%s0 + $0x100] sm:$0xff]
    %v61 = vld [vmem:[%s0 + $0x108] sm:$0xff]
    %v62 = vld [vmem:[%s0 + $0x110] sm:$0xff]
    %v63 = vld [vmem:[%s0 + $0x118] sm:$0xff]
    %v64 = vld [vmem:[%s0 + $0x120] sm:$0xff]
    %v65 = vld [vmem:[%s0 + $0x128] sm:$0xff]
    %v66 = vld [vmem:[%s0 + $0x130] sm:$0xff]
    %v67 = vld [vmem:[%s0 + $0x138] sm:$0xff]
    %v68 = vld [vmem:[%s0 + $0x140] sm:$0xff]
    %v69 = vld [vmem:[%s0 + $0x148] sm:$0xff]
    %v70 = vld [vmem:[%s0 + $0x150] sm:$0xff]
    %v71 = vld [vmem:[%s0 + $0x158] sm:$0xff]
    %v72 = vld [vmem:[%s0 + $0x160] sm:$0xff]
    %v73 = vld [vmem:[%s0 + $0x168] sm:$0xff]
    %v74 = vld [vmem:[%s0 + $0x170] sm:$0xff]
    %v75 = vld [vmem:[%s0 + $0x178] sm:$0xff]
    %v76 = vld [vmem:[%s0 + $0x180] sm:$0xff]
    %v77 = vld [vmem:[%s0 + $0x188] sm:$0xff]
    %v78 = vld [vmem:[%s0 + $0x190] sm:$0xff]
    %v79 = vld [vmem:[%s0 + $0x198] sm:$0xff]
    %v80 = vld [vmem:[%s0 + $0x1a0] sm:$0xff]
    %v81 = vld [vmem:[%s0 + $0x1a8] sm:$0xff]
    %v82 = vld [vmem:[%s0 + $0x1b0] sm:$0xff]
    %v83 = vld [vmem:[%s0 + $0x1b8] sm:$0xff]
    %v84 = vld [vmem:[%s0 + $0x1c0] sm:$0xff]
    %v85 = vld [vmem:[%s0 + $0x1c8] sm:$0xff]
    %v86 = vld [vmem:[%s0 + $0x1d0] sm:$0xff]
    %v87 = vld [vmem:[%s0 + $0x1d8] sm:$0xff]
    %v88 = vld [vmem:[%s0 + $0x1e0] sm:$0xff]
    %v89 = vld [vmem:[%s0 + $0x1e8] sm:$0xff]
    %v90 = vld [vmem:[%s0 + $0x1f0] sm:$0xff]
    %v91 = vld [vmem:[%s0 + $0x1f8] sm:$0xff]
    %v92 = vld [vmem:[%s0 + $0x200] sm:$0xff]
    %v93 = vld [vmem:[%s0 + $0x208] sm:$0xff]
    %v94 = vld [vmem:[%s0 + $0x210] sm:$0xff]
    %v95 = vld [vmem:[%s0 + $0x218] sm:$0xff]
    %v96 = vld [vmem:[%s0 + $0x220] sm:$0xff]
    %v97 = vld [vmem:[%s0 + $0x228] sm:$0xff]
    %v98 = vld [vmem:[%s0 + $0x230] sm:$0xff]
    %v99 = vld [vmem:[%s0 + $0x238] sm:$0xff]
    %v100 = vld [vmem:[%s0 + $0x240] sm:$0xff]
    %v101 = vld [vmem:[%s0 + $0x248] sm:$0xff]
    %v102 = vld [vmem:[%s0 + $0x250] sm:$0xff]
    %v103 = vld [vmem:[%s0 + $0x258] sm:$0xff]
    %v104 = vld [vmem:[%s0 + $0x260] sm:$0xff]
    %v105 = vld [vmem:[%s0 + $0x268] sm:$0xff]
    %v106 = vld [vmem:[%s0 + $0x270] sm:$0xff]
    %v107 = vld [vmem:[%s0 + $0x278] sm:$0xff]
    %v108 = vld [vmem:[%s0 + $0x280] sm:$0xff]
    %v109 = vld [vmem:[%s0 + $0x288] sm:$0xff]
    %v110 = vld [vmem:[%s0 + $0x290] sm:$0xff]
    %v111 = vld [vmem:[%s0 + $0x298] sm:$0xff]
    %v112 = vld [vmem:[%s0 + $0x2a0] sm:$0xff]
    %v113 = vld [vmem:[%s0 + $0x2a8] sm:$0xff]
    %v114 = vld [vmem:[%s0 + $0x2b0] sm:$0xff]
    %v115 = vld [vmem:[%s0 + $0x2b8] sm:$0xff]
    %v116 = vld [vmem:[%s0 + $0x2c0] sm:$0xff]
    %v117 = vld [vmem:[%s0 + $0x2c8] sm:$0xff]
    %v118 = vld [vmem:[%s0 + $0x2d0] sm:$0xff]
    %v119 = vld [vmem:[%s0 + $0x2d8] sm:$0xff]
    %v120 = vld [vmem:[%s0 + $0x2e0] sm:$0xff]
    %v121 = vld [vmem:[%s0 + $0x2e8] sm:$0xff]
    %v122 = vld [vmem:[%s0 + $0x2f0] sm:$0xff]
    %v123 = vld [vmem:[%s0 + $0x2f8] sm:$0xff]
    %v124 = vld [vmem:[%s0 + $0x300] sm:$0xff]
    %v125 = vld [vmem:[%s0 + $0x308] sm:$0xff]
    %v126 = vld [vmem:[%s0 + $0x310] sm:$0xff]
    %v127 = vld [vmem:[%s0 + $0x318] sm:$0xff]
    %v128 = vld [vmem:[%s0 + $0x320] sm:$0xff]
    %v129 = vld [vmem:[%s0 + $0x328] sm:$0xff]
    %v130 = vld [vmem:[%s0 + $0x330] sm:$0xff]
    %v131 = vld [vmem:[%s0 + $0x338] sm:$0xff]
    %v132 = vld [vmem:[%s0 + $0x340] sm:$0xff]
    %v133 = vld [vmem:[%s0 + $0x348] sm:$0xff]
    %v134 = vld [vmem:[%s0 + $0x350] sm:$0xff]
    %v135 = vld [vmem:[%s0 + $0x358] sm:$0xff]
    %v136 = vld [vmem:[%s0 + $0x360] sm:$0xff]
    %v137 = vld [vmem:[%s0 + $0x368] sm:$0xff]
    %v138 = vld [vmem:[%s0 + $0x370] sm:$0xff]
    %v139 = vld [vmem:[%s0 + $0x378] sm:$0xff]
    %v140 = vpack.c.bf16 %v35, %v28
    %v141 = vpack.c.bf16 %v36, %v29
    %v142 = vpack.c.bf16 %v37, %v30
    %v143 = vpack.c.bf16 %v38, %v31
    %v144 = vpack.c.bf16 %v39, %v32
    %v145 = vpack.c.bf16 %v40, %v33
    %v146 = vpack.c.bf16 %v41, %v34
    %v147 = vpack.c.bf16 %v49, %v42
    %v148 = vpack.c.bf16 %v50, %v43
    %v149 = vpack.c.bf16 %v51, %v44
    %v150 = vpack.c.bf16 %v52, %v45
    %v151 = vpack.c.bf16 %v53, %v46
    %v152 = vpack.c.bf16 %v54, %v47
    %v153 = vpack.c.bf16 %v55, %v48
    %v154 = vpack.c.bf16 %v63, %v56
    %v155 = vpack.c.bf16 %v64, %v57
    %v156 = vpack.c.bf16 %v65, %v58
    %v157 = vpack.c.bf16 %v66, %v59
    %v158 = vpack.c.bf16 %v67, %v60
    %v159 = vpack.c.bf16 %v68, %v61
    %v160 = vpack.c.bf16 %v69, %v62
    %v161 = vpack.c.bf16 %v77, %v70
    %v162 = vpack.c.bf16 %v78, %v71
    %v163 = vpack.c.bf16 %v79, %v72
    %v164 = vpack.c.bf16 %v80, %v73
    %v165 = vpack.c.bf16 %v81, %v74
    %v166 = vpack.c.bf16 %v82, %v75
    %v167 = vpack.c.bf16 %v83, %v76
    %v168 = vpack.c.bf16 %v91, %v84
    %v169 = vpack.c.bf16 %v92, %v85
    %v170 = vpack.c.bf16 %v93, %v86
    %v171 = vpack.c.bf16 %v94, %v87
    %v172 = vpack.c.bf16 %v95, %v88
    %v173 = vpack.c.bf16 %v96, %v89
    %v174 = vpack.c.bf16 %v97, %v90
    %v175 = vpack.c.bf16 %v105, %v98
    %v176 = vpack.c.bf16 %v106, %v99
    %v177 = vpack.c.bf16 %v107, %v100
    %v178 = vpack.c.bf16 %v108, %v101
    %v179 = vpack.c.bf16 %v109, %v102
    %v180 = vpack.c.bf16 %v110, %v103
    %v181 = vpack.c.bf16 %v111, %v104
    %v182 = vpack.c.bf16 %v119, %v112
    %v183 = vpack.c.bf16 %v120, %v113
    %v184 = vpack.c.bf16 %v121, %v114
    %v185 = vpack.c.bf16 %v122, %v115
    %v186 = vpack.c.bf16 %v123, %v116
    %v187 = vpack.c.bf16 %v124, %v117
    %v188 = vpack.c.bf16 %v125, %v118
    %v189 = vpack.c.bf16 %v133, %v126
    %v190 = vpack.c.bf16 %v134, %v127
    %v191 = vpack.c.bf16 %v135, %v128
    %v192 = vpack.c.bf16 %v136, %v129
    %v193 = vpack.c.bf16 %v137, %v130
    %v194 = vpack.c.bf16 %v138, %v131
    %v195 = vpack.c.bf16 %v139, %v132
    %v196 = vld [vmem:[%s1] sm:$0xf]
    %v197 = vld [vmem:[%s1 + $0x4] sm:$0xf]
    %v198 = vld [vmem:[%s1 + $0x8] sm:$0xf]
    %v199 = vld [vmem:[%s1 + $0xc] sm:$0xf]
    %v200 = vld [vmem:[%s1 + $0x10] sm:$0xf]
    %v201 = vld [vmem:[%s1 + $0x14] sm:$0xf]
    %v202 = vld [vmem:[%s1 + $0x18] sm:$0xf]
    %v203 = vld [vmem:[%s1 + $0x1c] sm:$0xf]
    %v204 = vld [vmem:[%s1 + $0x20] sm:$0xf]
    %v205 = vld [vmem:[%s1 + $0x24] sm:$0xf]
    %v206 = vld [vmem:[%s1 + $0x28] sm:$0xf]
    %v207 = vld [vmem:[%s1 + $0x2c] sm:$0xf]
    %v208 = vld [vmem:[%s1 + $0x30] sm:$0xf]
    %v209 = vld [vmem:[%s1 + $0x34] sm:$0xf]
    %v210 = vld [vmem:[%s1 + $0x38] sm:$0xf]
    %v211 = vld [vmem:[%s1 + $0x3c] sm:$0xf]
    %v212 = vld [vmem:[%s1 + $0x40] sm:$0xf]
    %v213 = vld [vmem:[%s1 + $0x44] sm:$0xf]
    %v214 = vld [vmem:[%s1 + $0x48] sm:$0xf]
    %v215 = vld [vmem:[%s1 + $0x4c] sm:$0xf]
    %v216 = vld [vmem:[%s1 + $0x50] sm:$0xf]
    %v217 = vld [vmem:[%s1 + $0x54] sm:$0xf]
    %v218 = vld [vmem:[%s1 + $0x58] sm:$0xf]
    %v219 = vld [vmem:[%s1 + $0x5c] sm:$0xf]
    %v220 = vld [vmem:[%s1 + $0x60] sm:$0xf]
    %v221 = vld [vmem:[%s1 + $0x64] sm:$0xf]
    %v222 = vld [vmem:[%s1 + $0x68] sm:$0xf]
    %v223 = vld [vmem:[%s1 + $0x6c] sm:$0xf]
    %v224 = vld [vmem:[%s1 + $0x70] sm:$0xf]
    %v225 = vld [vmem:[%s1 + $0x74] sm:$0xf]
    %v226 = vld [vmem:[%s1 + $0x78] sm:$0xf]
    %v227 = vld [vmem:[%s1 + $0x7c] sm:$0xf]
    %v228 = vld [vmem:[%s1 + $0x80] sm:$0xf]
    %v229 = vld [vmem:[%s1 + $0x84] sm:$0xf]
    %v230 = vld [vmem:[%s1 + $0x88] sm:$0xf]
    %v231 = vld [vmem:[%s1 + $0x8c] sm:$0xf]
    %v232 = vld [vmem:[%s1 + $0x90] sm:$0xf]
    %v233 = vld [vmem:[%s1 + $0x94] sm:$0xf]
    %v234 = vld [vmem:[%s1 + $0x98] sm:$0xf]
    %v235 = vld [vmem:[%s1 + $0x9c] sm:$0xf]
    %v236 = vld [vmem:[%s1 + $0xa0] sm:$0xf]
    %v237 = vld [vmem:[%s1 + $0xa4] sm:$0xf]
    %v238 = vld [vmem:[%s1 + $0xa8] sm:$0xf]
    %v239 = vld [vmem:[%s1 + $0xac] sm:$0xf]
    %v240 = vld [vmem:[%s1 + $0xb0] sm:$0xf]
    %v241 = vld [vmem:[%s1 + $0xb4] sm:$0xf]
    %v242 = vld [vmem:[%s1 + $0xb8] sm:$0xf]
    %v243 = vld [vmem:[%s1 + $0xbc] sm:$0xf]
    %v244 = vld [vmem:[%s1 + $0xc0] sm:$0xf]
    %v245 = vld [vmem:[%s1 + $0xc4] sm:$0xf]
    %v246 = vld [vmem:[%s1 + $0xc8] sm:$0xf]
    %v247 = vld [vmem:[%s1 + $0xcc] sm:$0xf]
    %v248 = vld [vmem:[%s1 + $0xd0] sm:$0xf]
    %v249 = vld [vmem:[%s1 + $0xd4] sm:$0xf]
    %v250 = vld [vmem:[%s1 + $0xd8] sm:$0xf]
    %v251 = vld [vmem:[%s1 + $0xdc] sm:$0xf]
    %v252 = vld [vmem:[%s1 + $0xe0] sm:$0xf]
    %v253 = vld [vmem:[%s1 + $0xe4] sm:$0xf]
    %v254 = vld [vmem:[%s1 + $0xe8] sm:$0xf]
    %v255 = vld [vmem:[%s1 + $0xec] sm:$0xf]
    %v256 = vld [vmem:[%s1 + $0xf0] sm:$0xf]
    %v257 = vld [vmem:[%s1 + $0xf4] sm:$0xf]
    %v258 = vld [vmem:[%s1 + $0xf8] sm:$0xf]
    %v259 = vld [vmem:[%s1 + $0xfc] sm:$0xf]
    %v260 = vld [vmem:[%s1 + $0x100] sm:$0xf]
    %v261 = vld [vmem:[%s1 + $0x104] sm:$0xf]
    %v262 = vld [vmem:[%s1 + $0x108] sm:$0xf]
    %v263 = vld [vmem:[%s1 + $0x10c] sm:$0xf]
    %v264 = vld [vmem:[%s1 + $0x110] sm:$0xf]
    %v265 = vld [vmem:[%s1 + $0x114] sm:$0xf]
    %v266 = vld [vmem:[%s1 + $0x118] sm:$0xf]
    %v267 = vld [vmem:[%s1 + $0x11c] sm:$0xf]
    %v268 = vld [vmem:[%s1 + $0x120] sm:$0xf]
    %v269 = vld [vmem:[%s1 + $0x124] sm:$0xf]
    %v270 = vld [vmem:[%s1 + $0x128] sm:$0xf]
    %v271 = vld [vmem:[%s1 + $0x12c] sm:$0xf]
    %v272 = vld [vmem:[%s1 + $0x130] sm:$0xf]
    %v273 = vld [vmem:[%s1 + $0x134] sm:$0xf]
    %v274 = vld [vmem:[%s1 + $0x138] sm:$0xf]
    %v275 = vld [vmem:[%s1 + $0x13c] sm:$0xf]
    %v276 = vld [vmem:[%s1 + $0x140] sm:$0xf]
    %v277 = vld [vmem:[%s1 + $0x144] sm:$0xf]
    %v278 = vld [vmem:[%s1 + $0x148] sm:$0xf]
    %v279 = vld [vmem:[%s1 + $0x14c] sm:$0xf]
    %v280 = vld [vmem:[%s1 + $0x150] sm:$0xf]
    %v281 = vld [vmem:[%s1 + $0x154] sm:$0xf]
    %v282 = vld [vmem:[%s1 + $0x158] sm:$0xf]
    %v283 = vld [vmem:[%s1 + $0x15c] sm:$0xf]
    %v284 = vld [vmem:[%s1 + $0x160] sm:$0xf]
    %v285 = vld [vmem:[%s1 + $0x164] sm:$0xf]
    %v286 = vld [vmem:[%s1 + $0x168] sm:$0xf]
    %v287 = vld [vmem:[%s1 + $0x16c] sm:$0xf]
    %v288 = vld [vmem:[%s1 + $0x170] sm:$0xf]
    %v289 = vld [vmem:[%s1 + $0x174] sm:$0xf]
    %v290 = vld [vmem:[%s1 + $0x178] sm:$0xf]
    %v291 = vld [vmem:[%s1 + $0x17c] sm:$0xf]
    %v292 = vld [vmem:[%s1 + $0x180] sm:$0xf]
    %v293 = vld [vmem:[%s1 + $0x184] sm:$0xf]
    %v294 = vld [vmem:[%s2] sm:$0x1]
    %v296 = vperm.slane %v294, 0
    %v396 = vunpack.c.l.b16 %v196
    %v397 = vunpack.c.l.b16 %v197
    %v398 = vunpack.c.l.b16 %v198
    %v399 = vunpack.c.l.b16 %v199
    %v400 = vunpack.c.l.b16 %v200
    %v401 = vunpack.c.l.b16 %v201
    %v402 = vunpack.c.l.b16 %v202
    %v403 = vunpack.c.l.b16 %v203
    %v404 = vunpack.c.l.b16 %v204
    %v405 = vunpack.c.l.b16 %v205
    %v406 = vunpack.c.l.b16 %v206
    %v407 = vunpack.c.l.b16 %v207
    %v408 = vunpack.c.l.b16 %v208
    %v409 = vunpack.c.l.b16 %v209
    %v410 = vunpack.c.l.b16 %v210
    %v411 = vunpack.c.l.b16 %v211
    %v412 = vunpack.c.l.b16 %v212
    %v413 = vunpack.c.l.b16 %v213
    %v414 = vunpack.c.l.b16 %v214
    %v415 = vunpack.c.l.b16 %v215
    %v416 = vunpack.c.l.b16 %v216
    %v417 = vunpack.c.l.b16 %v217
    %v418 = vunpack.c.l.b16 %v218
    %v419 = vunpack.c.l.b16 %v219
    %v420 = vunpack.c.l.b16 %v220
    %v421 = vunpack.c.l.b16 %v221
    %v422 = vunpack.c.l.b16 %v222
    %v423 = vunpack.c.l.b16 %v223
    %v424 = vunpack.c.l.b16 %v224
    %v425 = vunpack.c.l.b16 %v225
    %v426 = vunpack.c.l.b16 %v226
    %v427 = vunpack.c.l.b16 %v227
    %v428 = vunpack.c.l.b16 %v228
    %v429 = vunpack.c.l.b16 %v229
    %v430 = vunpack.c.l.b16 %v230
    %v431 = vunpack.c.l.b16 %v231
    %v432 = vunpack.c.l.b16 %v232
    %v433 = vunpack.c.l.b16 %v233
    %v434 = vunpack.c.l.b16 %v234
    %v435 = vunpack.c.l.b16 %v235
    %v436 = vunpack.c.l.b16 %v236
    %v437 = vunpack.c.l.b16 %v237
    %v438 = vunpack.c.l.b16 %v238
    %v439 = vunpack.c.l.b16 %v239
    %v440 = vunpack.c.l.b16 %v240
    %v441 = vunpack.c.l.b16 %v241
    %v442 = vunpack.c.l.b16 %v242
    %v443 = vunpack.c.l.b16 %v243
    %v444 = vunpack.c.l.b16 %v244
    %v445 = vunpack.c.l.b16 %v245
    %v446 = vunpack.c.l.b16 %v246
    %v447 = vunpack.c.l.b16 %v247
    %v448 = vunpack.c.l.b16 %v248
    %v449 = vunpack.c.l.b16 %v249
    %v450 = vunpack.c.l.b16 %v250
    %v451 = vunpack.c.l.b16 %v251
    %v452 = vunpack.c.l.b16 %v252
    %v453 = vunpack.c.l.b16 %v253
    %v454 = vunpack.c.l.b16 %v254
    %v455 = vunpack.c.l.b16 %v255
    %v456 = vunpack.c.l.b16 %v256
    %v457 = vunpack.c.l.b16 %v257
    %v458 = vunpack.c.l.b16 %v258
    %v459 = vunpack.c.l.b16 %v259
    %v460 = vunpack.c.l.b16 %v260
    %v461 = vunpack.c.l.b16 %v261
    %v462 = vunpack.c.l.b16 %v262
    %v463 = vunpack.c.l.b16 %v263
    %v464 = vunpack.c.l.b16 %v264
    %v465 = vunpack.c.l.b16 %v265
    %v466 = vunpack.c.l.b16 %v266
    %v467 = vunpack.c.l.b16 %v267
    %v468 = vunpack.c.l.b16 %v268
    %v469 = vunpack.c.l.b16 %v269
    %v470 = vunpack.c.l.b16 %v270
    %v471 = vunpack.c.l.b16 %v271
    %v472 = vunpack.c.l.b16 %v272
    %v473 = vunpack.c.l.b16 %v273
    %v474 = vunpack.c.l.b16 %v274
    %v475 = vunpack.c.l.b16 %v275
    %v476 = vunpack.c.l.b16 %v276
    %v477 = vunpack.c.l.b16 %v277
    %v478 = vunpack.c.l.b16 %v278
    %v479 = vunpack.c.l.b16 %v279
    %v480 = vunpack.c.l.b16 %v280
    %v481 = vunpack.c.l.b16 %v281
    %v482 = vunpack.c.l.b16 %v282
    %v483 = vunpack.c.l.b16 %v283
    %v484 = vunpack.c.l.b16 %v284
    %v485 = vunpack.c.l.b16 %v285
    %v486 = vunpack.c.l.b16 %v286
    %v487 = vunpack.c.l.b16 %v287
    %v488 = vunpack.c.l.b16 %v288
    %v489 = vunpack.c.l.b16 %v289
    %v490 = vunpack.c.l.b16 %v290
    %v491 = vunpack.c.l.b16 %v291
    %v492 = vunpack.c.l.b16 %v292
    %v493 = vunpack.c.l.b16 %v293
    %v494 = vpack.c.b16 %v397, %v396
    %v495 = vpack.c.b16 %v399, %v398
    %v496 = vpack.c.b16 %v401, %v400
    %v497 = vpack.c.b16 %v403, %v402
    %v498 = vpack.c.b16 %v405, %v404
    %v499 = vpack.c.b16 %v407, %v406
    %v500 = vpack.c.b16 %v409, %v408
    %v501 = vpack.c.b16 %v411, %v410
    %v502 = vpack.c.b16 %v413, %v412
    %v503 = vpack.c.b16 %v415, %v414
    %v504 = vpack.c.b16 %v417, %v416
    %v505 = vpack.c.b16 %v419, %v418
    %v506 = vpack.c.b16 %v421, %v420
    %v507 = vpack.c.b16 %v423, %v422
    %v508 = vpack.c.b16 %v425, %v424
    %v509 = vpack.c.b16 %v427, %v426
    %v510 = vpack.c.b16 %v429, %v428
    %v511 = vpack.c.b16 %v431, %v430
    %v512 = vpack.c.b16 %v433, %v432
    %v513 = vpack.c.b16 %v435, %v434
    %v514 = vpack.c.b16 %v437, %v436
    %v515 = vpack.c.b16 %v439, %v438
    %v516 = vpack.c.b16 %v441, %v440
    %v517 = vpack.c.b16 %v443, %v442
    %v518 = vpack.c.b16 %v445, %v444
    %v519 = vpack.c.b16 %v447, %v446
    %v520 = vpack.c.b16 %v449, %v448
    %v521 = vpack.c.b16 %v451, %v450
    %v522 = vpack.c.b16 %v453, %v452
    %v523 = vpack.c.b16 %v455, %v454
    %v524 = vpack.c.b16 %v457, %v456
    %v525 = vpack.c.b16 %v459, %v458
    %v526 = vpack.c.b16 %v461, %v460
    %v527 = vpack.c.b16 %v463, %v462
    %v528 = vpack.c.b16 %v465, %v464
    %v529 = vpack.c.b16 %v467, %v466
    %v530 = vpack.c.b16 %v469, %v468
    %v531 = vpack.c.b16 %v471, %v470
    %v532 = vpack.c.b16 %v473, %v472
    %v533 = vpack.c.b16 %v475, %v474
    %v534 = vpack.c.b16 %v477, %v476
    %v535 = vpack.c.b16 %v479, %v478
    %v536 = vpack.c.b16 %v481, %v480
    %v537 = vpack.c.b16 %v483, %v482
    %v538 = vpack.c.b16 %v485, %v484
    %v539 = vpack.c.b16 %v487, %v486
    %v540 = vpack.c.b16 %v489, %v488
    %v541 = vpack.c.b16 %v491, %v490
    %v542 = vpack.c.b16 %v493, %v492
    %vm592 = vcmask 130048
    %v594 = vsel %vm592, %v146, 0
    %v597 = vsel %vm592, %v153, 0
    %v600 = vsel %vm592, %v160, 0
    %v603 = vsel %vm592, %v167, 0
    %v606 = vsel %vm592, %v174, 0
    %v609 = vsel %vm592, %v181, 0
    %v612 = vsel %vm592, %v188, 0
    %v615 = vsel %vm592, %v195, 0
    %617 = vmatpush.bf16.msra.mxu0 %v501
    %618 = vmatpush.bf16.msra.mxu0 %v500
    %619 = vmatpush.bf16.msra.mxu0 %v499
    %620 = vmatpush.bf16.msra.mxu0 %v498
    %621 = vmatpush.bf16.msra.mxu0 %v497
    %622 = vmatpush.bf16.msra.mxu0 %v496
    %623 = vmatpush.bf16.msra.mxu0 %v495
    %624 = vmatpush.bf16.msra.mxu0 %v494
    %625 = vmatmul.bf16.gmra.mxu0 %v140
    %v626 = vpop.f32.mrf.mxu0
    %v627 = vadd.f32 %v296, %v626
    %v628 = vpop.f32.mrf.mxu0
    %v629 = vadd.f32 %v296, %v628
    %630 = vmatmul.bf16.gmra.mxu0 %v147
    %v631 = vpop.f32.mrf.mxu0
    %v632 = vadd.f32 %v296, %v631
    %v633 = vpop.f32.mrf.mxu0
    %v634 = vadd.f32 %v296, %v633
    %635 = vmatmul.bf16.gmra.mxu0 %v154
    %v636 = vpop.f32.mrf.mxu0
    %v637 = vadd.f32 %v296, %v636
    %v638 = vpop.f32.mrf.mxu0
    %v639 = vadd.f32 %v296, %v638
    %640 = vmatmul.bf16.gmra.mxu0 %v161
    %v641 = vpop.f32.mrf.mxu0
    %v642 = vadd.f32 %v296, %v641
    %v643 = vpop.f32.mrf.mxu0
    %v644 = vadd.f32 %v296, %v643
    %645 = vmatmul.bf16.gmra.mxu0 %v168
    %v646 = vpop.f32.mrf.mxu0
    %v647 = vadd.f32 %v296, %v646
    %v648 = vpop.f32.mrf.mxu0
    %v649 = vadd.f32 %v296, %v648
    %650 = vmatmul.bf16.gmra.mxu0 %v175
    %v651 = vpop.f32.mrf.mxu0
    %v652 = vadd.f32 %v296, %v651
    %v653 = vpop.f32.mrf.mxu0
    %v654 = vadd.f32 %v296, %v653
    %655 = vmatmul.bf16.gmra.mxu0 %v182
    %v656 = vpop.f32.mrf.mxu0
    %v657 = vadd.f32 %v296, %v656
    %v658 = vpop.f32.mrf.mxu0
    %v659 = vadd.f32 %v296, %v658
    %660 = vmatmul.bf16.gmra.mxu0 %v189
    %v661 = vpop.f32.mrf.mxu0
    %v662 = vadd.f32 %v296, %v661
    %v663 = vpop.f32.mrf.mxu0
    %v664 = vadd.f32 %v296, %v663
    %665 = vdwg.mxu0
    %666 = vmatpush.bf16.msra.mxu0 %v509
    %667 = vmatpush.bf16.msra.mxu0 %v508
    %668 = vmatpush.bf16.msra.mxu0 %v507
    %669 = vmatpush.bf16.msra.mxu0 %v506
    %670 = vmatpush.bf16.msra.mxu0 %v505
    %671 = vmatpush.bf16.msra.mxu0 %v504
    %672 = vmatpush.bf16.msra.mxu0 %v503
    %673 = vmatpush.bf16.msra.mxu0 %v502
    %674 = vmatmul.bf16.gmra.mxu0 %v141
    %v675 = vpop.f32.mrf.mxu0
    %v676 = vadd.f32 %v627, %v675
    %v677 = vpop.f32.mrf.mxu0
    %v678 = vadd.f32 %v629, %v677
    %679 = vmatmul.bf16.gmra.mxu0 %v148
    %v680 = vpop.f32.mrf.mxu0
    %v681 = vadd.f32 %v632, %v680
    %v682 = vpop.f32.mrf.mxu0
    %v683 = vadd.f32 %v634, %v682
    %684 = vmatmul.bf16.gmra.mxu0 %v155
    %v685 = vpop.f32.mrf.mxu0
    %v686 = vadd.f32 %v637, %v685
    %v687 = vpop.f32.mrf.mxu0
    %v688 = vadd.f32 %v639, %v687
    %689 = vmatmul.bf16.gmra.mxu0 %v162
    %v690 = vpop.f32.mrf.mxu0
    %v691 = vadd.f32 %v642, %v690
    %v692 = vpop.f32.mrf.mxu0
    %v693 = vadd.f32 %v644, %v692
    %694 = vmatmul.bf16.gmra.mxu0 %v169
    %v695 = vpop.f32.mrf.mxu0
    %v696 = vadd.f32 %v647, %v695
    %v697 = vpop.f32.mrf.mxu0
    %v698 = vadd.f32 %v649, %v697
    %699 = vmatmul.bf16.gmra.mxu0 %v176
    %v700 = vpop.f32.mrf.mxu0
    %v701 = vadd.f32 %v652, %v700
    %v702 = vpop.f32.mrf.mxu0
    %v703 = vadd.f32 %v654, %v702
    %704 = vmatmul.bf16.gmra.mxu0 %v183
    %v705 = vpop.f32.mrf.mxu0
    %v706 = vadd.f32 %v657, %v705
    %v707 = vpop.f32.mrf.mxu0
    %v708 = vadd.f32 %v659, %v707
    %709 = vmatmul.bf16.gmra.mxu0 %v190
    %v710 = vpop.f32.mrf.mxu0
    %v711 = vadd.f32 %v662, %v710
    %v712 = vpop.f32.mrf.mxu0
    %v713 = vadd.f32 %v664, %v712
    %714 = vdwg.mxu0
    %715 = vmatpush.bf16.msra.mxu0 %v517
    %716 = vmatpush.bf16.msra.mxu0 %v516
    %717 = vmatpush.bf16.msra.mxu0 %v515
    %718 = vmatpush.bf16.msra.mxu0 %v514
    %719 = vmatpush.bf16.msra.mxu0 %v513
    %720 = vmatpush.bf16.msra.mxu0 %v512
    %721 = vmatpush.bf16.msra.mxu0 %v511
    %722 = vmatpush.bf16.msra.mxu0 %v510
    %723 = vmatmul.bf16.gmra.mxu0 %v142
    %v724 = vpop.f32.mrf.mxu0
    %v725 = vadd.f32 %v676, %v724
    %v726 = vpop.f32.mrf.mxu0
    %v727 = vadd.f32 %v678, %v726
    %728 = vmatmul.bf16.gmra.mxu0 %v149
    %v729 = vpop.f32.mrf.mxu0
    %v730 = vadd.f32 %v681, %v729
    %v731 = vpop.f32.mrf.mxu0
    %v732 = vadd.f32 %v683, %v731
    %733 = vmatmul.bf16.gmra.mxu0 %v156
    %v734 = vpop.f32.mrf.mxu0
    %v735 = vadd.f32 %v686, %v734
    %v736 = vpop.f32.mrf.mxu0
    %v737 = vadd.f32 %v688, %v736
    %738 = vmatmul.bf16.gmra.mxu0 %v163
    %v739 = vpop.f32.mrf.mxu0
    %v740 = vadd.f32 %v691, %v739
    %v741 = vpop.f32.mrf.mxu0
    %v742 = vadd.f32 %v693, %v741
    %743 = vmatmul.bf16.gmra.mxu0 %v170
    %v744 = vpop.f32.mrf.mxu0
    %v745 = vadd.f32 %v696, %v744
    %v746 = vpop.f32.mrf.mxu0
    %v747 = vadd.f32 %v698, %v746
    %748 = vmatmul.bf16.gmra.mxu0 %v177
    %v749 = vpop.f32.mrf.mxu0
    %v750 = vadd.f32 %v701, %v749
    %v751 = vpop.f32.mrf.mxu0
    %v752 = vadd.f32 %v703, %v751
    %753 = vmatmul.bf16.gmra.mxu0 %v184
    %v754 = vpop.f32.mrf.mxu0
    %v755 = vadd.f32 %v706, %v754
    %v756 = vpop.f32.mrf.mxu0
    %v757 = vadd.f32 %v708, %v756
    %758 = vmatmul.bf16.gmra.mxu0 %v191
    %v759 = vpop.f32.mrf.mxu0
    %v760 = vadd.f32 %v711, %v759
    %v761 = vpop.f32.mrf.mxu0
    %v762 = vadd.f32 %v713, %v761
    %763 = vdwg.mxu0
    %764 = vmatpush.bf16.msra.mxu0 %v525
    %765 = vmatpush.bf16.msra.mxu0 %v524
    %766 = vmatpush.bf16.msra.mxu0 %v523
    %767 = vmatpush.bf16.msra.mxu0 %v522
    %768 = vmatpush.bf16.msra.mxu0 %v521
    %769 = vmatpush.bf16.msra.mxu0 %v520
    %770 = vmatpush.bf16.msra.mxu0 %v519
    %771 = vmatpush.bf16.msra.mxu0 %v518
    %772 = vmatmul.bf16.gmra.mxu0 %v143
    %v773 = vpop.f32.mrf.mxu0
    %v774 = vadd.f32 %v725, %v773
    %v775 = vpop.f32.mrf.mxu0
    %v776 = vadd.f32 %v727, %v775
    %777 = vmatmul.bf16.gmra.mxu0 %v150
    %v778 = vpop.f32.mrf.mxu0
    %v779 = vadd.f32 %v730, %v778
    %v780 = vpop.f32.mrf.mxu0
    %v781 = vadd.f32 %v732, %v780
    %782 = vmatmul.bf16.gmra.mxu0 %v157
    %v783 = vpop.f32.mrf.mxu0
    %v784 = vadd.f32 %v735, %v783
    %v785 = vpop.f32.mrf.mxu0
    %v786 = vadd.f32 %v737, %v785
    %787 = vmatmul.bf16.gmra.mxu0 %v164
    %v788 = vpop.f32.mrf.mxu0
    %v789 = vadd.f32 %v740, %v788
    %v790 = vpop.f32.mrf.mxu0
    %v791 = vadd.f32 %v742, %v790
    %792 = vmatmul.bf16.gmra.mxu0 %v171
    %v793 = vpop.f32.mrf.mxu0
    %v794 = vadd.f32 %v745, %v793
    %v795 = vpop.f32.mrf.mxu0
    %v796 = vadd.f32 %v747, %v795
    %797 = vmatmul.bf16.gmra.mxu0 %v178
    %v798 = vpop.f32.mrf.mxu0
    %v799 = vadd.f32 %v750, %v798
    %v800 = vpop.f32.mrf.mxu0
    %v801 = vadd.f32 %v752, %v800
    %802 = vmatmul.bf16.gmra.mxu0 %v185
    %v803 = vpop.f32.mrf.mxu0
    %v804 = vadd.f32 %v755, %v803
    %v805 = vpop.f32.mrf.mxu0
    %v806 = vadd.f32 %v757, %v805
    %807 = vmatmul.bf16.gmra.mxu0 %v192
    %v808 = vpop.f32.mrf.mxu0
    %v809 = vadd.f32 %v760, %v808
    %v810 = vpop.f32.mrf.mxu0
    %v811 = vadd.f32 %v762, %v810
    %812 = vdwg.mxu0
    %813 = vmatpush.bf16.msra.mxu0 %v533
    %814 = vmatpush.bf16.msra.mxu0 %v532
    %815 = vmatpush.bf16.msra.mxu0 %v531
    %816 = vmatpush.bf16.msra.mxu0 %v530
    %817 = vmatpush.bf16.msra.mxu0 %v529
    %818 = vmatpush.bf16.msra.mxu0 %v528
    %819 = vmatpush.bf16.msra.mxu0 %v527
    %820 = vmatpush.bf16.msra.mxu0 %v526
    %821 = vmatmul.bf16.gmra.mxu0 %v144
    %v822 = vpop.f32.mrf.mxu0
    %v823 = vadd.f32 %v774, %v822
    %v824 = vpop.f32.mrf.mxu0
    %v825 = vadd.f32 %v776, %v824
    %826 = vmatmul.bf16.gmra.mxu0 %v151
    %v827 = vpop.f32.mrf.mxu0
    %v828 = vadd.f32 %v779, %v827
    %v829 = vpop.f32.mrf.mxu0
    %v830 = vadd.f32 %v781, %v829
    %831 = vmatmul.bf16.gmra.mxu0 %v158
    %v832 = vpop.f32.mrf.mxu0
    %v833 = vadd.f32 %v784, %v832
    %v834 = vpop.f32.mrf.mxu0
    %v835 = vadd.f32 %v786, %v834
    %836 = vmatmul.bf16.gmra.mxu0 %v165
    %v837 = vpop.f32.mrf.mxu0
    %v838 = vadd.f32 %v789, %v837
    %v839 = vpop.f32.mrf.mxu0
    %v840 = vadd.f32 %v791, %v839
    %841 = vmatmul.bf16.gmra.mxu0 %v172
    %v842 = vpop.f32.mrf.mxu0
    %v843 = vadd.f32 %v794, %v842
    %v844 = vpop.f32.mrf.mxu0
    %v845 = vadd.f32 %v796, %v844
    %846 = vmatmul.bf16.gmra.mxu0 %v179
    %v847 = vpop.f32.mrf.mxu0
    %v848 = vadd.f32 %v799, %v847
    %v849 = vpop.f32.mrf.mxu0
    %v850 = vadd.f32 %v801, %v849
    %851 = vmatmul.bf16.gmra.mxu0 %v186
    %v852 = vpop.f32.mrf.mxu0
    %v853 = vadd.f32 %v804, %v852
    %v854 = vpop.f32.mrf.mxu0
    %v855 = vadd.f32 %v806, %v854
    %856 = vmatmul.bf16.gmra.mxu0 %v193
    %v857 = vpop.f32.mrf.mxu0
    %v858 = vadd.f32 %v809, %v857
    %v859 = vpop.f32.mrf.mxu0
    %v860 = vadd.f32 %v811, %v859
    %861 = vdwg.mxu0
    %862 = vmatpush.bf16.msra.mxu0 %v541
    %863 = vmatpush.bf16.msra.mxu0 %v540
    %864 = vmatpush.bf16.msra.mxu0 %v539
    %865 = vmatpush.bf16.msra.mxu0 %v538
    %866 = vmatpush.bf16.msra.mxu0 %v537
    %867 = vmatpush.bf16.msra.mxu0 %v536
    %868 = vmatpush.bf16.msra.mxu0 %v535
    %869 = vmatpush.bf16.msra.mxu0 %v534
    %870 = vmatmul.bf16.gmra.mxu0 %v145
    %v871 = vpop.f32.mrf.mxu0
    %v872 = vadd.f32 %v823, %v871
    %v873 = vpop.f32.mrf.mxu0
    %v874 = vadd.f32 %v825, %v873
    %875 = vmatmul.bf16.gmra.mxu0 %v152
    %v876 = vpop.f32.mrf.mxu0
    %v877 = vadd.f32 %v828, %v876
    %v878 = vpop.f32.mrf.mxu0
    %v879 = vadd.f32 %v830, %v878
    %880 = vmatmul.bf16.gmra.mxu0 %v159
    %v881 = vpop.f32.mrf.mxu0
    %v882 = vadd.f32 %v833, %v881
    %v883 = vpop.f32.mrf.mxu0
    %v884 = vadd.f32 %v835, %v883
    %885 = vmatmul.bf16.gmra.mxu0 %v166
    %v886 = vpop.f32.mrf.mxu0
    %v887 = vadd.f32 %v838, %v886
    %v888 = vpop.f32.mrf.mxu0
    %v889 = vadd.f32 %v840, %v888
    %890 = vmatmul.bf16.gmra.mxu0 %v173
    %v891 = vpop.f32.mrf.mxu0
    %v892 = vadd.f32 %v843, %v891
    %v893 = vpop.f32.mrf.mxu0
    %v894 = vadd.f32 %v845, %v893
    %895 = vmatmul.bf16.gmra.mxu0 %v180
    %v896 = vpop.f32.mrf.mxu0
    %v897 = vadd.f32 %v848, %v896
    %v898 = vpop.f32.mrf.mxu0
    %v899 = vadd.f32 %v850, %v898
    %900 = vmatmul.bf16.gmra.mxu0 %v187
    %v901 = vpop.f32.mrf.mxu0
    %v902 = vadd.f32 %v853, %v901
    %v903 = vpop.f32.mrf.mxu0
    %v904 = vadd.f32 %v855, %v903
    %905 = vmatmul.bf16.gmra.mxu0 %v194
    %v906 = vpop.f32.mrf.mxu0
    %v907 = vadd.f32 %v858, %v906
    %v908 = vpop.f32.mrf.mxu0
    %v909 = vadd.f32 %v860, %v908
    %910 = vdwg.mxu0
    %911 = vmatpush.bf16.msra.mxu0 0
    %912 = vmatpush.bf16.msra.mxu0 0
    %913 = vmatpush.bf16.msra.mxu0 0
    %914 = vmatpush.bf16.msra.mxu0 0
    %915 = vmatpush.bf16.msra.mxu0 0
    %916 = vmatpush.bf16.msra.mxu0 0
    %917 = vmatpush.bf16.msra.mxu0 0
    %918 = vmatpush.bf16.msra.mxu0 %v542
    %919 = vmatmul.bf16.gmra.mxu0 %v594
    %v920 = vpop.f32.mrf.mxu0
    %v921 = vadd.f32 %v872, %v920
    %v922 = vpop.f32.mrf.mxu0
    %v923 = vadd.f32 %v874, %v922
    %924 = vmatmul.bf16.gmra.mxu0 %v597
    %v925 = vpop.f32.mrf.mxu0
    %v926 = vadd.f32 %v877, %v925
    %v927 = vpop.f32.mrf.mxu0
    %v928 = vadd.f32 %v879, %v927
    %929 = vmatmul.bf16.gmra.mxu0 %v600
    %v930 = vpop.f32.mrf.mxu0
    %v931 = vadd.f32 %v882, %v930
    %v932 = vpop.f32.mrf.mxu0
    %v933 = vadd.f32 %v884, %v932
    %934 = vmatmul.bf16.gmra.mxu0 %v603
    %v935 = vpop.f32.mrf.mxu0
    %v936 = vadd.f32 %v887, %v935
    %v937 = vpop.f32.mrf.mxu0
    %v938 = vadd.f32 %v889, %v937
    %939 = vmatmul.bf16.gmra.mxu0 %v606
    %v940 = vpop.f32.mrf.mxu0
    %v941 = vadd.f32 %v892, %v940
    %v942 = vpop.f32.mrf.mxu0
    %v943 = vadd.f32 %v894, %v942
    %944 = vmatmul.bf16.gmra.mxu0 %v609
    %v945 = vpop.f32.mrf.mxu0
    %v946 = vadd.f32 %v897, %v945
    %v947 = vpop.f32.mrf.mxu0
    %v948 = vadd.f32 %v899, %v947
    %949 = vmatmul.bf16.gmra.mxu0 %v612
    %v950 = vpop.f32.mrf.mxu0
    %v951 = vadd.f32 %v902, %v950
    %v952 = vpop.f32.mrf.mxu0
    %v953 = vadd.f32 %v904, %v952
    %954 = vmatmul.bf16.gmra.mxu0 %v615
    %v955 = vpop.f32.mrf.mxu0
    %v956 = vadd.f32 %v907, %v955
    %v957 = vpop.f32.mrf.mxu0
    %v958 = vadd.f32 %v909, %v957
    %959 = vdwg.mxu0
    %v960 = vpack.c.bf16 %v923, %v921
    %v961 = vpack.c.bf16 %v928, %v926
    %v962 = vpack.c.bf16 %v933, %v931
    %v963 = vpack.c.bf16 %v938, %v936
    %v964 = vpack.c.bf16 %v943, %v941
    %v965 = vpack.c.bf16 %v948, %v946
    %v966 = vpack.c.bf16 %v953, %v951
    %v967 = vpack.c.bf16 %v958, %v956
    %v968 = vld [vmem:[%s3] sm:$0xff]
    %v969 = vld [vmem:[%s3 + $0x8] sm:$0xff]
    %v970 = vld [vmem:[%s3 + $0x10] sm:$0xff]
    %v971 = vld [vmem:[%s3 + $0x18] sm:$0xff]
    %v972 = vld [vmem:[%s3 + $0x20] sm:$0xff]
    %v973 = vld [vmem:[%s3 + $0x28] sm:$0xff]
    %v974 = vld [vmem:[%s3 + $0x30] sm:$0xff]
    %v975 = vld [vmem:[%s3 + $0x38] sm:$0xff]
    %v976 = vld [vmem:[%s3 + $0x40] sm:$0xff]
    %v977 = vld [vmem:[%s3 + $0x48] sm:$0xff]
    %v978 = vld [vmem:[%s3 + $0x50] sm:$0xff]
    %v979 = vld [vmem:[%s3 + $0x58] sm:$0xff]
    %v980 = vld [vmem:[%s3 + $0x60] sm:$0xff]
    %v981 = vld [vmem:[%s3 + $0x68] sm:$0xff]
    %v982 = vld [vmem:[%s3 + $0x70] sm:$0xff]
    %v983 = vld [vmem:[%s3 + $0x78] sm:$0xff]
    %v984 = vld [vmem:[%s4] sm:$0x3]
    %v986 = vperm.slane %v984, 0
    %v987 = vperm.slane %v984, 1
    %v1006 = vunpack.c.l.b16 %v968
    %v1007 = vunpack.c.h.b16 %v968
    %v1008 = vunpack.c.l.b16 %v969
    %v1009 = vunpack.c.h.b16 %v969
    %v1010 = vunpack.c.l.b16 %v970
    %v1011 = vunpack.c.h.b16 %v970
    %v1012 = vunpack.c.l.b16 %v971
    %v1013 = vunpack.c.h.b16 %v971
    %v1014 = vunpack.c.l.b16 %v972
    %v1015 = vunpack.c.h.b16 %v972
    %v1016 = vunpack.c.l.b16 %v973
    %v1017 = vunpack.c.h.b16 %v973
    %v1018 = vunpack.c.l.b16 %v974
    %v1019 = vunpack.c.h.b16 %v974
    %v1020 = vunpack.c.l.b16 %v975
    %v1021 = vunpack.c.h.b16 %v975
    %v1022 = vunpack.c.l.b16 %v976
    %v1023 = vunpack.c.h.b16 %v976
    %v1024 = vunpack.c.l.b16 %v977
    %v1025 = vunpack.c.h.b16 %v977
    %v1026 = vunpack.c.l.b16 %v978
    %v1027 = vunpack.c.h.b16 %v978
    %v1028 = vunpack.c.l.b16 %v979
    %v1029 = vunpack.c.h.b16 %v979
    %v1030 = vunpack.c.l.b16 %v980
    %v1031 = vunpack.c.h.b16 %v980
    %v1032 = vunpack.c.l.b16 %v981
    %v1033 = vunpack.c.h.b16 %v981
    %v1034 = vunpack.c.l.b16 %v982
    %v1035 = vunpack.c.h.b16 %v982
    %v1036 = vunpack.c.l.b16 %v983
    %v1037 = vunpack.c.h.b16 %v983
    %v1038 = vpack.c.b16 %v1008, %v1006
    %v1039 = vpack.c.b16 %v1009, %v1007
    %v1040 = vpack.c.b16 %v1012, %v1010
    %v1041 = vpack.c.b16 %v1013, %v1011
    %v1042 = vpack.c.b16 %v1016, %v1014
    %v1043 = vpack.c.b16 %v1017, %v1015
    %v1044 = vpack.c.b16 %v1020, %v1018
    %v1045 = vpack.c.b16 %v1021, %v1019
    %v1046 = vpack.c.b16 %v1024, %v1022
    %v1047 = vpack.c.b16 %v1025, %v1023
    %v1048 = vpack.c.b16 %v1028, %v1026
    %v1049 = vpack.c.b16 %v1029, %v1027
    %v1050 = vpack.c.b16 %v1032, %v1030
    %v1051 = vpack.c.b16 %v1033, %v1031
    %v1052 = vpack.c.b16 %v1036, %v1034
    %v1053 = vpack.c.b16 %v1037, %v1035
    %1070 = vmatpush.bf16.msra.mxu0 %v1052
    %1071 = vmatpush.bf16.msra.mxu0 %v1050
    %1072 = vmatpush.bf16.msra.mxu0 %v1048
    %1073 = vmatpush.bf16.msra.mxu0 %v1046
    %1074 = vmatpush.bf16.msra.mxu0 %v1044
    %1075 = vmatpush.bf16.msra.mxu0 %v1042
    %1076 = vmatpush.bf16.msra.mxu0 %v1040
    %1077 = vmatpush.bf16.msra.mxu0 %v1038
    %1078 = vmatmul.bf16.gmra.mxu0 %v960
    %v1079 = vpop.f32.mrf.mxu0
    %v1080 = vadd.f32 %v986, %v1079
    %v1081 = vpop.f32.mrf.mxu0
    %v1082 = vadd.f32 %v986, %v1081
    %1083 = vmatmul.bf16.gmra.mxu0 %v961
    %v1084 = vpop.f32.mrf.mxu0
    %v1085 = vadd.f32 %v986, %v1084
    %v1086 = vpop.f32.mrf.mxu0
    %v1087 = vadd.f32 %v986, %v1086
    %1088 = vmatmul.bf16.gmra.mxu0 %v962
    %v1089 = vpop.f32.mrf.mxu0
    %v1090 = vadd.f32 %v986, %v1089
    %v1091 = vpop.f32.mrf.mxu0
    %v1092 = vadd.f32 %v986, %v1091
    %1093 = vmatmul.bf16.gmra.mxu0 %v963
    %v1094 = vpop.f32.mrf.mxu0
    %v1095 = vadd.f32 %v986, %v1094
    %v1096 = vpop.f32.mrf.mxu0
    %v1097 = vadd.f32 %v986, %v1096
    %1098 = vmatmul.bf16.gmra.mxu0 %v964
    %v1099 = vpop.f32.mrf.mxu0
    %v1100 = vadd.f32 %v986, %v1099
    %v1101 = vpop.f32.mrf.mxu0
    %v1102 = vadd.f32 %v986, %v1101
    %1103 = vmatmul.bf16.gmra.mxu0 %v965
    %v1104 = vpop.f32.mrf.mxu0
    %v1105 = vadd.f32 %v986, %v1104
    %v1106 = vpop.f32.mrf.mxu0
    %v1107 = vadd.f32 %v986, %v1106
    %1108 = vmatmul.bf16.gmra.mxu0 %v966
    %v1109 = vpop.f32.mrf.mxu0
    %v1110 = vadd.f32 %v986, %v1109
    %v1111 = vpop.f32.mrf.mxu0
    %v1112 = vadd.f32 %v986, %v1111
    %1113 = vmatmul.bf16.gmra.mxu0 %v967
    %v1114 = vpop.f32.mrf.mxu0
    %v1115 = vadd.f32 %v986, %v1114
    %v1116 = vpop.f32.mrf.mxu0
    %v1117 = vadd.f32 %v986, %v1116
    %1118 = vdwg.mxu0
    %1119 = vmatpush.bf16.msra.mxu0 %v1053
    %1120 = vmatpush.bf16.msra.mxu0 %v1051
    %1121 = vmatpush.bf16.msra.mxu0 %v1049
    %1122 = vmatpush.bf16.msra.mxu0 %v1047
    %1123 = vmatpush.bf16.msra.mxu0 %v1045
    %1124 = vmatpush.bf16.msra.mxu0 %v1043
    %1125 = vmatpush.bf16.msra.mxu0 %v1041
    %1126 = vmatpush.bf16.msra.mxu0 %v1039
    %1127 = vmatmul.bf16.gmra.mxu0 %v960
    %v1128 = vpop.f32.mrf.mxu0
    %v1129 = vadd.f32 %v987, %v1128
    %v1130 = vpop.f32.mrf.mxu0
    %v1131 = vadd.f32 %v987, %v1130
    %1132 = vmatmul.bf16.gmra.mxu0 %v961
    %v1133 = vpop.f32.mrf.mxu0
    %v1134 = vadd.f32 %v987, %v1133
    %v1135 = vpop.f32.mrf.mxu0
    %v1136 = vadd.f32 %v987, %v1135
    %1137 = vmatmul.bf16.gmra.mxu0 %v962
    %v1138 = vpop.f32.mrf.mxu0
    %v1139 = vadd.f32 %v987, %v1138
    %v1140 = vpop.f32.mrf.mxu0
    %v1141 = vadd.f32 %v987, %v1140
    %1142 = vmatmul.bf16.gmra.mxu0 %v963
    %v1143 = vpop.f32.mrf.mxu0
    %v1144 = vadd.f32 %v987, %v1143
    %v1145 = vpop.f32.mrf.mxu0
    %v1146 = vadd.f32 %v987, %v1145
    %1147 = vmatmul.bf16.gmra.mxu0 %v964
    %v1148 = vpop.f32.mrf.mxu0
    %v1149 = vadd.f32 %v987, %v1148
    %v1150 = vpop.f32.mrf.mxu0
    %v1151 = vadd.f32 %v987, %v1150
    %1152 = vmatmul.bf16.gmra.mxu0 %v965
    %v1153 = vpop.f32.mrf.mxu0
    %v1154 = vadd.f32 %v987, %v1153
    %v1155 = vpop.f32.mrf.mxu0
    %v1156 = vadd.f32 %v987, %v1155
    %1157 = vmatmul.bf16.gmra.mxu0 %v966
    %v1158 = vpop.f32.mrf.mxu0
    %v1159 = vadd.f32 %v987, %v1158
    %v1160 = vpop.f32.mrf.mxu0
    %v1161 = vadd.f32 %v987, %v1160
    %1162 = vmatmul.bf16.gmra.mxu0 %v967
    %v1163 = vpop.f32.mrf.mxu0
    %v1164 = vadd.f32 %v987, %v1163
    %v1165 = vpop.f32.mrf.mxu0
    %v1166 = vadd.f32 %v987, %v1165
    %1167 = vdwg.mxu0
    %v1168 = vpack.c.bf16 %v1082, %v1080
    %v1169 = vpack.c.bf16 %v1131, %v1129
    %v1170 = vpack.c.bf16 %v1087, %v1085
    %v1171 = vpack.c.bf16 %v1136, %v1134
    %v1172 = vpack.c.bf16 %v1092, %v1090
    %v1173 = vpack.c.bf16 %v1141, %v1139
    %v1174 = vpack.c.bf16 %v1097, %v1095
    %v1175 = vpack.c.bf16 %v1146, %v1144
    %v1176 = vpack.c.bf16 %v1102, %v1100
    %v1177 = vpack.c.bf16 %v1151, %v1149
    %v1178 = vpack.c.bf16 %v1107, %v1105
    %v1179 = vpack.c.bf16 %v1156, %v1154
    %v1180 = vpack.c.bf16 %v1112, %v1110
    %v1181 = vpack.c.bf16 %v1161, %v1159
    %v1182 = vpack.c.bf16 %v1117, %v1115
    %v1183 = vpack.c.bf16 %v1166, %v1164
    %v1184 = vld [vmem:[%s5] sm:$0xf]
    %v1185 = vld [vmem:[%s5 + $0x4] sm:$0xf]
    %v1186 = vld [vmem:[%s5 + $0x8] sm:$0xf]
    %v1187 = vld [vmem:[%s5 + $0xc] sm:$0xf]
    %v1188 = vld [vmem:[%s5 + $0x10] sm:$0xf]
    %v1189 = vld [vmem:[%s5 + $0x14] sm:$0xf]
    %v1190 = vld [vmem:[%s5 + $0x18] sm:$0xf]
    %v1191 = vld [vmem:[%s5 + $0x1c] sm:$0xf]
    %v1192 = vld [vmem:[%s5 + $0x20] sm:$0xf]
    %v1193 = vld [vmem:[%s5 + $0x24] sm:$0xf]
    %v1194 = vld [vmem:[%s5 + $0x28] sm:$0xf]
    %v1195 = vld [vmem:[%s5 + $0x2c] sm:$0xf]
    %v1196 = vld [vmem:[%s5 + $0x30] sm:$0xf]
    %v1197 = vld [vmem:[%s5 + $0x34] sm:$0xf]
    %v1198 = vld [vmem:[%s5 + $0x38] sm:$0xf]
    %v1199 = vld [vmem:[%s5 + $0x3c] sm:$0xf]
    %v1200 = vld [vmem:[%s5 + $0x40] sm:$0xf]
    %v1201 = vld [vmem:[%s5 + $0x44] sm:$0xf]
    %v1202 = vld [vmem:[%s5 + $0x48] sm:$0xf]
    %v1203 = vld [vmem:[%s5 + $0x4c] sm:$0xf]
    %v1204 = vld [vmem:[%s5 + $0x50] sm:$0xf]
    %v1205 = vld [vmem:[%s5 + $0x54] sm:$0xf]
    %v1206 = vld [vmem:[%s5 + $0x58] sm:$0xf]
    %v1207 = vld [vmem:[%s5 + $0x5c] sm:$0xf]
    %v1208 = vld [vmem:[%s5 + $0x60] sm:$0xf]
    %v1209 = vld [vmem:[%s5 + $0x64] sm:$0xf]
    %v1210 = vld [vmem:[%s5 + $0x68] sm:$0xf]
    %v1211 = vld [vmem:[%s5 + $0x6c] sm:$0xf]
    %v1212 = vld [vmem:[%s5 + $0x70] sm:$0xf]
    %v1213 = vld [vmem:[%s5 + $0x74] sm:$0xf]
    %v1214 = vld [vmem:[%s5 + $0x78] sm:$0xf]
    %v1215 = vld [vmem:[%s5 + $0x7c] sm:$0xf]
    %v1216 = vld [vmem:[%s6] sm:$0x1]
    %v1218 = vperm.slane %v1216, 0
    %v1252 = vunpack.c.l.b16 %v1184
    %v1253 = vunpack.c.l.b16 %v1185
    %v1254 = vunpack.c.l.b16 %v1186
    %v1255 = vunpack.c.l.b16 %v1187
    %v1256 = vunpack.c.l.b16 %v1188
    %v1257 = vunpack.c.l.b16 %v1189
    %v1258 = vunpack.c.l.b16 %v1190
    %v1259 = vunpack.c.l.b16 %v1191
    %v1260 = vunpack.c.l.b16 %v1192
    %v1261 = vunpack.c.l.b16 %v1193
    %v1262 = vunpack.c.l.b16 %v1194
    %v1263 = vunpack.c.l.b16 %v1195
    %v1264 = vunpack.c.l.b16 %v1196
    %v1265 = vunpack.c.l.b16 %v1197
    %v1266 = vunpack.c.l.b16 %v1198
    %v1267 = vunpack.c.l.b16 %v1199
    %v1268 = vunpack.c.l.b16 %v1200
    %v1269 = vunpack.c.l.b16 %v1201
    %v1270 = vunpack.c.l.b16 %v1202
    %v1271 = vunpack.c.l.b16 %v1203
    %v1272 = vunpack.c.l.b16 %v1204
    %v1273 = vunpack.c.l.b16 %v1205
    %v1274 = vunpack.c.l.b16 %v1206
    %v1275 = vunpack.c.l.b16 %v1207
    %v1276 = vunpack.c.l.b16 %v1208
    %v1277 = vunpack.c.l.b16 %v1209
    %v1278 = vunpack.c.l.b16 %v1210
    %v1279 = vunpack.c.l.b16 %v1211
    %v1280 = vunpack.c.l.b16 %v1212
    %v1281 = vunpack.c.l.b16 %v1213
    %v1282 = vunpack.c.l.b16 %v1214
    %v1283 = vunpack.c.l.b16 %v1215
    %v1284 = vpack.c.b16 %v1253, %v1252
    %v1285 = vpack.c.b16 %v1255, %v1254
    %v1286 = vpack.c.b16 %v1257, %v1256
    %v1287 = vpack.c.b16 %v1259, %v1258
    %v1288 = vpack.c.b16 %v1261, %v1260
    %v1289 = vpack.c.b16 %v1263, %v1262
    %v1290 = vpack.c.b16 %v1265, %v1264
    %v1291 = vpack.c.b16 %v1267, %v1266
    %v1292 = vpack.c.b16 %v1269, %v1268
    %v1293 = vpack.c.b16 %v1271, %v1270
    %v1294 = vpack.c.b16 %v1273, %v1272
    %v1295 = vpack.c.b16 %v1275, %v1274
    %v1296 = vpack.c.b16 %v1277, %v1276
    %v1297 = vpack.c.b16 %v1279, %v1278
    %v1298 = vpack.c.b16 %v1281, %v1280
    %v1299 = vpack.c.b16 %v1283, %v1282
    %1316 = vmatpush.bf16.msra.mxu0 %v1291
    %1317 = vmatpush.bf16.msra.mxu0 %v1290
    %1318 = vmatpush.bf16.msra.mxu0 %v1289
    %1319 = vmatpush.bf16.msra.mxu0 %v1288
    %1320 = vmatpush.bf16.msra.mxu0 %v1287
    %1321 = vmatpush.bf16.msra.mxu0 %v1286
    %1322 = vmatpush.bf16.msra.mxu0 %v1285
    %1323 = vmatpush.bf16.msra.mxu0 %v1284
    %1324 = vmatmul.bf16.gmra.mxu0 %v1168
    %v1325 = vpop.f32.mrf.mxu0
    %v1326 = vadd.f32 %v1218, %v1325
    %v1327 = vpop.f32.mrf.mxu0
    %v1328 = vadd.f32 %v1218, %v1327
    %1329 = vmatmul.bf16.gmra.mxu0 %v1170
    %v1330 = vpop.f32.mrf.mxu0
    %v1331 = vadd.f32 %v1218, %v1330
    %v1332 = vpop.f32.mrf.mxu0
    %v1333 = vadd.f32 %v1218, %v1332
    %1334 = vmatmul.bf16.gmra.mxu0 %v1172
    %v1335 = vpop.f32.mrf.mxu0
    %v1336 = vadd.f32 %v1218, %v1335
    %v1337 = vpop.f32.mrf.mxu0
    %v1338 = vadd.f32 %v1218, %v1337
    %1339 = vmatmul.bf16.gmra.mxu0 %v1174
    %v1340 = vpop.f32.mrf.mxu0
    %v1341 = vadd.f32 %v1218, %v1340
    %v1342 = vpop.f32.mrf.mxu0
    %v1343 = vadd.f32 %v1218, %v1342
    %1344 = vmatmul.bf16.gmra.mxu0 %v1176
    %v1345 = vpop.f32.mrf.mxu0
    %v1346 = vadd.f32 %v1218, %v1345
    %v1347 = vpop.f32.mrf.mxu0
    %v1348 = vadd.f32 %v1218, %v1347
    %1349 = vmatmul.bf16.gmra.mxu0 %v1178
    %v1350 = vpop.f32.mrf.mxu0
    %v1351 = vadd.f32 %v1218, %v1350
    %v1352 = vpop.f32.mrf.mxu0
    %v1353 = vadd.f32 %v1218, %v1352
    %1354 = vmatmul.bf16.gmra.mxu0 %v1180
    %v1355 = vpop.f32.mrf.mxu0
    %v1356 = vadd.f32 %v1218, %v1355
    %v1357 = vpop.f32.mrf.mxu0
    %v1358 = vadd.f32 %v1218, %v1357
    %1359 = vmatmul.bf16.gmra.mxu0 %v1182
    %v1360 = vpop.f32.mrf.mxu0
    %v1361 = vadd.f32 %v1218, %v1360
    %v1362 = vpop.f32.mrf.mxu0
    %v1363 = vadd.f32 %v1218, %v1362
    %1364 = vdwg.mxu0
    %1365 = vmatpush.bf16.msra.mxu0 %v1299
    %1366 = vmatpush.bf16.msra.mxu0 %v1298
    %1367 = vmatpush.bf16.msra.mxu0 %v1297
    %1368 = vmatpush.bf16.msra.mxu0 %v1296
    %1369 = vmatpush.bf16.msra.mxu0 %v1295
    %1370 = vmatpush.bf16.msra.mxu0 %v1294
    %1371 = vmatpush.bf16.msra.mxu0 %v1293
    %1372 = vmatpush.bf16.msra.mxu0 %v1292
    %1373 = vmatmul.bf16.gmra.mxu0 %v1169
    %v1374 = vpop.f32.mrf.mxu0
    %v1375 = vadd.f32 %v1326, %v1374
    %v1376 = vpop.f32.mrf.mxu0
    %v1377 = vadd.f32 %v1328, %v1376
    %1378 = vmatmul.bf16.gmra.mxu0 %v1171
    %v1379 = vpop.f32.mrf.mxu0
    %v1380 = vadd.f32 %v1331, %v1379
    %v1381 = vpop.f32.mrf.mxu0
    %v1382 = vadd.f32 %v1333, %v1381
    %1383 = vmatmul.bf16.gmra.mxu0 %v1173
    %v1384 = vpop.f32.mrf.mxu0
    %v1385 = vadd.f32 %v1336, %v1384
    %v1386 = vpop.f32.mrf.mxu0
    %v1387 = vadd.f32 %v1338, %v1386
    %1388 = vmatmul.bf16.gmra.mxu0 %v1175
    %v1389 = vpop.f32.mrf.mxu0
    %v1390 = vadd.f32 %v1341, %v1389
    %v1391 = vpop.f32.mrf.mxu0
    %v1392 = vadd.f32 %v1343, %v1391
    %1393 = vmatmul.bf16.gmra.mxu0 %v1177
    %v1394 = vpop.f32.mrf.mxu0
    %v1395 = vadd.f32 %v1346, %v1394
    %v1396 = vpop.f32.mrf.mxu0
    %v1397 = vadd.f32 %v1348, %v1396
    %1398 = vmatmul.bf16.gmra.mxu0 %v1179
    %v1399 = vpop.f32.mrf.mxu0
    %v1400 = vadd.f32 %v1351, %v1399
    %v1401 = vpop.f32.mrf.mxu0
    %v1402 = vadd.f32 %v1353, %v1401
    %1403 = vmatmul.bf16.gmra.mxu0 %v1181
    %v1404 = vpop.f32.mrf.mxu0
    %v1405 = vadd.f32 %v1356, %v1404
    %v1406 = vpop.f32.mrf.mxu0
    %v1407 = vadd.f32 %v1358, %v1406
    %1408 = vmatmul.bf16.gmra.mxu0 %v1183
    %v1409 = vpop.f32.mrf.mxu0
    %v1410 = vadd.f32 %v1361, %v1409
    %v1411 = vpop.f32.mrf.mxu0
    %v1412 = vadd.f32 %v1363, %v1411
    %1413 = vdwg.mxu0
    %v1414 = vpack.c.bf16 %v1375, %v1375
    %v1415 = vpack.c.bf16 %v1377, %v1377
    %v1416 = vpack.c.bf16 %v1380, %v1380
    %v1417 = vpack.c.bf16 %v1382, %v1382
    %v1418 = vpack.c.bf16 %v1385, %v1385
    %v1419 = vpack.c.bf16 %v1387, %v1387
    %v1420 = vpack.c.bf16 %v1390, %v1390
    %v1421 = vpack.c.bf16 %v1392, %v1392
    %v1422 = vpack.c.bf16 %v1395, %v1395
    %v1423 = vpack.c.bf16 %v1397, %v1397
    %v1424 = vpack.c.bf16 %v1400, %v1400
    %v1425 = vpack.c.bf16 %v1402, %v1402
    %v1426 = vpack.c.bf16 %v1405, %v1405
    %v1427 = vpack.c.bf16 %v1407, %v1407
    %v1428 = vpack.c.bf16 %v1410, %v1410
    %v1429 = vpack.c.bf16 %v1412, %v1412
    %1430 = vst [vmem:[#allocation2] sm:$0xf] %v1414
    %1431 = vst [vmem:[#allocation2 + $0x4] sm:$0xf] %v1415
    %1432 = vst [vmem:[#allocation2 + $0x8] sm:$0xf] %v1416
    %1433 = vst [vmem:[#allocation2 + $0xc] sm:$0xf] %v1417
    %1434 = vst [vmem:[#allocation2 + $0x10] sm:$0xf] %v1418
    %1435 = vst [vmem:[#allocation2 + $0x14] sm:$0xf] %v1419
    %1436 = vst [vmem:[#allocation2 + $0x18] sm:$0xf] %v1420
    %1437 = vst [vmem:[#allocation2 + $0x1c] sm:$0xf] %v1421
    %1438 = vst [vmem:[#allocation2 + $0x20] sm:$0xf] %v1422
    %1439 = vst [vmem:[#allocation2 + $0x24] sm:$0xf] %v1423
    %1440 = vst [vmem:[#allocation2 + $0x28] sm:$0xf] %v1424
    %1441 = vst [vmem:[#allocation2 + $0x2c] sm:$0xf] %v1425
    %1442 = vst [vmem:[#allocation2 + $0x30] sm:$0xf] %v1426
    %1443 = vst [vmem:[#allocation2 + $0x34] sm:$0xf] %v1427
    %1444 = vst [vmem:[#allocation2 + $0x38] sm:$0xf] %v1428
    %1445 = vst [vmem:[#allocation2 + $0x3c] sm:$0xf] %v1429
    // Predicated region
    $region30: #{tpu_custom_call.1} parent=1 // pred_check
      _
    $region31: #{tpu_custom_call.1} parent=1 // pred_check_branch
      %1447 = sbr.rel (0) target = $region33
    $region32: #{tpu_custom_call.1} parent=1 // pred_region
      %1449 = vsyncadd [#allocation3], 0
      %s1450 = sshll.u32 [#allocation2], 4
      %s1451 = int_to_ptr.vmem [resolvable:$true] %s1450
      %s1452 = sshll.u32 %s7, 4
      %s1453 = int_to_ptr.hbm [resolvable:$true] %s1452
      %1458 = dma.vmem_to_hbm [thread:$0]  %s1451, 1024, %s1453, [#allocation3], 64, 64, 4
    $region33: #{tpu_custom_call.1} parent=1 // pred_fallthru
      _
    // Predicated region
    $region34: #{tpu_custom_call.1} parent=1 // pred_check
      _
    $region35: #{tpu_custom_call.1} parent=1 // pred_check_branch
      %1460 = sbr.rel (0) target = $region37
    $region36: #{tpu_custom_call.1} parent=1 // pred_region
      %1462 = dma.done [#allocation3], 1024
    $region37: #{tpu_custom_call.1} parent=1 // pred_fallthru
      _
    %1463 = vsyncpa [#allocation3], 1

// kernel: tpu_custom_call.1
$region0: #{tpu_custom_call.1}
  #allocation0 [shape = 'u32[]', space=smem, size = 0x4, offset = 0x4, fixed_abs, tag = 'smem constant byte address 0x4 - core index']
  #allocation1 [shape = 'u32[72,128]{1,0:T(1,128)}', space=vmem, size = 0x9000, scoped, tag = 'internal scratch']
  %s0 = inlined_call_operand.vmem [shape: f32[128,784], index: 0, kind: input, shape index: {}]
  %s1 = inlined_call_operand.vmem [shape: bf16[784,128], index: 1, kind: input, shape index: {}]
  %s2 = inlined_call_operand.vmem [shape: f32[1,128], index: 2, kind: input, shape index: {}]
  %s3 = inlined_call_operand.vmem [shape: bf16[128,256], index: 3, kind: input, shape index: {}]
  %s4 = inlined_call_operand.vmem [shape: f32[1,256], index: 4, kind: input, shape index: {}]
  %s5 = inlined_call_operand.vmem [shape: bf16[256,128], index: 5, kind: input, shape index: {}]
  %s6 = inlined_call_operand.vmem [shape: f32[1,128], index: 6, kind: input, shape index: {}]
  %s7 = inlined_call_operand.hbm [shape: bf16[128,128], index: 7, kind: output, shape index: {}]
  %s8 = sld [smem:[#allocation0]]
  $region38: #{tpu_custom_call.1} parent=0
    _
  %s10 = ssub.s32 1, %s8
  %s11 = scalar_select 0, %s10, %s8
  $region1: #{tpu_custom_call.1} parent=0
    #allocation2 [shape = 'u8[32768]{0}', space=vmem, size = 0x8000, scoped, tag = 'output window, operand 0, single buffered']
    #allocation3 [shape = 's32[1]{0}', space=sflag, size = 0x4, scoped, tag = 'scoped memory for tpu_custom_call.1']
    %12 = vsyncpa [#allocation3], 0
    // Predicated region
    $region2: #{tpu_custom_call.1} parent=1 // pred_check
      _
    $region3: #{tpu_custom_call.1} parent=1 // pred_check_branch
      %14 = sbr.rel (0) target = $region5
    $region4: #{tpu_custom_call.1} parent=1 // pred_region
      _
    $region5: #{tpu_custom_call.1} parent=1 // pred_fallthru
      _
    // Predicated region
    $region6: #{tpu_custom_call.1} parent=1 // pred_check
      _
    $region7: #{tpu_custom_call.1} parent=1 // pred_check_branch
      %16 = sbr.rel (0) target = $region9
    $region8: #{tpu_custom_call.1} parent=1 // pred_region
      _
    $region9: #{tpu_custom_call.1} parent=1 // pred_fallthru
      _
    // Predicated region
    $region10: #{tpu_custom_call.1} parent=1 // pred_check
      _
    $region11: #{tpu_custom_call.1} parent=1 // pred_check_branch
      %18 = sbr.rel (0) target = $region13
    $region12: #{tpu_custom_call.1} parent=1 // pred_region
      _
    $region13: #{tpu_custom_call.1} parent=1 // pred_fallthru
      _
    // Predicated region
    $region14: #{tpu_custom_call.1} parent=1 // pred_check
      _
    $region15: #{tpu_custom_call.1} parent=1 // pred_check_branch
      %20 = sbr.rel (0) target = $region17
    $region16: #{tpu_custom_call.1} parent=1 // pred_region
      _
    $region17: #{tpu_custom_call.1} parent=1 // pred_fallthru
      _
    // Predicated region
    $region18: #{tpu_custom_call.1} parent=1 // pred_check
      _
    $region19: #{tpu_custom_call.1} parent=1 // pred_check_branch
      %22 = sbr.rel (0) target = $region21
    $region20: #{tpu_custom_call.1} parent=1 // pred_region
      _
    $region21: #{tpu_custom_call.1} parent=1 // pred_fallthru
      _
    // Predicated region
    $region22: #{tpu_custom_call.1} parent=1 // pred_check
      _
    $region23: #{tpu_custom_call.1} parent=1 // pred_check_branch
      %24 = sbr.rel (0) target = $region25
    $region24: #{tpu_custom_call.1} parent=1 // pred_region
      _
    $region25: #{tpu_custom_call.1} parent=1 // pred_fallthru
      _
    // Predicated region
    $region26: #{tpu_custom_call.1} parent=1 // pred_check
      _
    $region27: #{tpu_custom_call.1} parent=1 // pred_check_branch
      %26 = sbr.rel (0) target = $region29
    $region28: #{tpu_custom_call.1} parent=1 // pred_region
      _
    $region29: #{tpu_custom_call.1} parent=1 // pred_fallthru
      _
    %v28 = vld [vmem:[%s0] sm:$0xff]
    %v29 = vld [vmem:[%s0 + $0x8] sm:$0xff]
    %v30 = vld [vmem:[%s0 + $0x10] sm:$0xff]
    %v31 = vld [vmem:[%s0 + $0x18] sm:$0xff]
    %v32 = vld [vmem:[%s0 + $0x20] sm:$0xff]
    %v33 = vld [vmem:[%s0 + $0x28] sm:$0xff]
    %v34 = vld [vmem:[%s0 + $0x30] sm:$0xff]
    %v35 = vld [vmem:[%s0 + $0x38] sm:$0xff]
    %v36 = vld [vmem:[%s0 + $0x40] sm:$0xff]
    %v37 = vld [vmem:[%s0 + $0x48] sm:$0xff]
    %v38 = vld [vmem:[%s0 + $0x50] sm:$0xff]
    %v39 = vld [vmem:[%s0 + $0x58] sm:$0xff]
    %v40 = vld [vmem:[%s0 + $0x60] sm:$0xff]
    %v41 = vld [vmem:[%s0 + $0x68] sm:$0xff]
    %v42 = vld [vmem:[%s0 + $0x70] sm:$0xff]
    %v43 = vld [vmem:[%s0 + $0x78] sm:$0xff]
    %v44 = vld [vmem:[%s0 + $0x80] sm:$0xff]
    %v45 = vld [vmem:[%s0 + $0x88] sm:$0xff]
    %v46 = vld [vmem:[%s0 + $0x90] sm:$0xff]
    %v47 = vld [vmem:[%s0 + $0x98] sm:$0xff]
    %v48 = vld [vmem:[%s0 + $0xa0] sm:$0xff]
    %v49 = vld [vmem:[%s0 + $0xa8] sm:$0xff]
    %v50 = vld [vmem:[%s0 + $0xb0] sm:$0xff]
    %v51 = vld [vmem:[%s0 + $0xb8] sm:$0xff]
    %v52 = vld [vmem:[%s0 + $0xc0] sm:$0xff]
    %v53 = vld [vmem:[%s0 + $0xc8] sm:$0xff]
    %v54 = vld [vmem:[%s0 + $0xd0] sm:$0xff]
    %v55 = vld [vmem:[%s0 + $0xd8] sm:$0xff]
    %v56 = vld [vmem:[%s0 + $0xe0] sm:$0xff]
    %v57 = vld [vmem:[%s0 + $0xe8] sm:$0xff]
    %v58 = vld [vmem:[%s0 + $0xf0] sm:$0xff]
    %v59 = vld [vmem:[%s0 + $0xf8] sm:$0xff]
    %v60 = vld [vmem:[%s0 + $0x100] sm:$0xff]
    %v61 = vld [vmem:[%s0 + $0x108] sm:$0xff]
    %v62 = vld [vmem:[%s0 + $0x110] sm:$0xff]
    %v63 = vld [vmem:[%s0 + $0x118] sm:$0xff]
    %v64 = vld [vmem:[%s0 + $0x120] sm:$0xff]
    %v65 = vld [vmem:[%s0 + $0x128] sm:$0xff]
    %v66 = vld [vmem:[%s0 + $0x130] sm:$0xff]
    %v67 = vld [vmem:[%s0 + $0x138] sm:$0xff]
    %v68 = vld [vmem:[%s0 + $0x140] sm:$0xff]
    %v69 = vld [vmem:[%s0 + $0x148] sm:$0xff]
    %v70 = vld [vmem:[%s0 + $0x150] sm:$0xff]
    %v71 = vld [vmem:[%s0 + $0x158] sm:$0xff]
    %v72 = vld [vmem:[%s0 + $0x160] sm:$0xff]
    %v73 = vld [vmem:[%s0 + $0x168] sm:$0xff]
    %v74 = vld [vmem:[%s0 + $0x170] sm:$0xff]
    %v75 = vld [vmem:[%s0 + $0x178] sm:$0xff]
    %v76 = vld [vmem:[%s0 + $0x180] sm:$0xff]
    %v77 = vld [vmem:[%s0 + $0x188] sm:$0xff]
    %v78 = vld [vmem:[%s0 + $0x190] sm:$0xff]
    %v79 = vld [vmem:[%s0 + $0x198] sm:$0xff]
    %v80 = vld [vmem:[%s0 + $0x1a0] sm:$0xff]
    %v81 = vld [vmem:[%s0 + $0x1a8] sm:$0xff]
    %v82 = vld [vmem:[%s0 + $0x1b0] sm:$0xff]
    %v83 = vld [vmem:[%s0 + $0x1b8] sm:$0xff]
    %v84 = vld [vmem:[%s0 + $0x1c0] sm:$0xff]
    %v85 = vld [vmem:[%s0 + $0x1c8] sm:$0xff]
    %v86 = vld [vmem:[%s0 + $0x1d0] sm:$0xff]
    %v87 = vld [vmem:[%s0 + $0x1d8] sm:$0xff]
    %v88 = vld [vmem:[%s0 + $0x1e0] sm:$0xff]
    %v89 = vld [vmem:[%s0 + $0x1e8] sm:$0xff]
    %v90 = vld [vmem:[%s0 + $0x1f0] sm:$0xff]
    %v91 = vld [vmem:[%s0 + $0x1f8] sm:$0xff]
    %v92 = vld [vmem:[%s0 + $0x200] sm:$0xff]
    %v93 = vld [vmem:[%s0 + $0x208] sm:$0xff]
    %v94 = vld [vmem:[%s0 + $0x210] sm:$0xff]
    %v95 = vld [vmem:[%s0 + $0x218] sm:$0xff]
    %v96 = vld [vmem:[%s0 + $0x220] sm:$0xff]
    %v97 = vld [vmem:[%s0 + $0x228] sm:$0xff]
    %v98 = vld [vmem:[%s0 + $0x230] sm:$0xff]
    %v99 = vld [vmem:[%s0 + $0x238] sm:$0xff]
    %v100 = vld [vmem:[%s0 + $0x240] sm:$0xff]
    %v101 = vld [vmem:[%s0 + $0x248] sm:$0xff]
    %v102 = vld [vmem:[%s0 + $0x250] sm:$0xff]
    %v103 = vld [vmem:[%s0 + $0x258] sm:$0xff]
    %v104 = vld [vmem:[%s0 + $0x260] sm:$0xff]
    %v105 = vld [vmem:[%s0 + $0x268] sm:$0xff]
    %v106 = vld [vmem:[%s0 + $0x270] sm:$0xff]
    %v107 = vld [vmem:[%s0 + $0x278] sm:$0xff]
    %v108 = vld [vmem:[%s0 + $0x280] sm:$0xff]
    %v109 = vld [vmem:[%s0 + $0x288] sm:$0xff]
    %v110 = vld [vmem:[%s0 + $0x290] sm:$0xff]
    %v111 = vld [vmem:[%s0 + $0x298] sm:$0xff]
    %v112 = vld [vmem:[%s0 + $0x2a0] sm:$0xff]
    %v113 = vld [vmem:[%s0 + $0x2a8] sm:$0xff]
    %v114 = vld [vmem:[%s0 + $0x2b0] sm:$0xff]
    %v115 = vld [vmem:[%s0 + $0x2b8] sm:$0xff]
    %v116 = vld [vmem:[%s0 + $0x2c0] sm:$0xff]
    %v117 = vld [vmem:[%s0 + $0x2c8] sm:$0xff]
    %v118 = vld [vmem:[%s0 + $0x2d0] sm:$0xff]
    %v119 = vld [vmem:[%s0 + $0x2d8] sm:$0xff]
    %v120 = vld [vmem:[%s0 + $0x2e0] sm:$0xff]
    %v121 = vld [vmem:[%s0 + $0x2e8] sm:$0xff]
    %v122 = vld [vmem:[%s0 + $0x2f0] sm:$0xff]
    %v123 = vld [vmem:[%s0 + $0x2f8] sm:$0xff]
    %v124 = vld [vmem:[%s0 + $0x300] sm:$0xff]
    %v125 = vld [vmem:[%s0 + $0x308] sm:$0xff]
    %v126 = vld [vmem:[%s0 + $0x310] sm:$0xff]
    %v127 = vld [vmem:[%s0 + $0x318] sm:$0xff]
    %v128 = vld [vmem:[%s0 + $0x320] sm:$0xff]
    %v129 = vld [vmem:[%s0 + $0x328] sm:$0xff]
    %v130 = vld [vmem:[%s0 + $0x330] sm:$0xff]
    %v131 = vld [vmem:[%s0 + $0x338] sm:$0xff]
    %v132 = vld [vmem:[%s0 + $0x340] sm:$0xff]
    %v133 = vld [vmem:[%s0 + $0x348] sm:$0xff]
    %v134 = vld [vmem:[%s0 + $0x350] sm:$0xff]
    %v135 = vld [vmem:[%s0 + $0x358] sm:$0xff]
    %v136 = vld [vmem:[%s0 + $0x360] sm:$0xff]
    %v137 = vld [vmem:[%s0 + $0x368] sm:$0xff]
    %v138 = vld [vmem:[%s0 + $0x370] sm:$0xff]
    %v139 = vld [vmem:[%s0 + $0x378] sm:$0xff]
    %v140 = vpack.c.bf16 %v35, %v28
    %v141 = vpack.c.bf16 %v36, %v29
    %v142 = vpack.c.bf16 %v37, %v30
    %v143 = vpack.c.bf16 %v38, %v31
    %v144 = vpack.c.bf16 %v39, %v32
    %v145 = vpack.c.bf16 %v40, %v33
    %v146 = vpack.c.bf16 %v41, %v34
    %v147 = vpack.c.bf16 %v49, %v42
    %v148 = vpack.c.bf16 %v50, %v43
    %v149 = vpack.c.bf16 %v51, %v44
    %v150 = vpack.c.bf16 %v52, %v45
    %v151 = vpack.c.bf16 %v53, %v46
    %v152 = vpack.c.bf16 %v54, %v47
    %v153 = vpack.c.bf16 %v55, %v48
    %v154 = vpack.c.bf16 %v63, %v56
    %v155 = vpack.c.bf16 %v64, %v57
    %v156 = vpack.c.bf16 %v65, %v58
    %v157 = vpack.c.bf16 %v66, %v59
    %v158 = vpack.c.bf16 %v67, %v60
    %v159 = vpack.c.bf16 %v68, %v61
    %v160 = vpack.c.bf16 %v69, %v62
    %v161 = vpack.c.bf16 %v77, %v70
    %v162 = vpack.c.bf16 %v78, %v71
    %v163 = vpack.c.bf16 %v79, %v72
    %v164 = vpack.c.bf16 %v80, %v73
    %v165 = vpack.c.bf16 %v81, %v74
    %v166 = vpack.c.bf16 %v82, %v75
    %v167 = vpack.c.bf16 %v83, %v76
    %v168 = vpack.c.bf16 %v91, %v84
    %v169 = vpack.c.bf16 %v92, %v85
    %v170 = vpack.c.bf16 %v93, %v86
    %v171 = vpack.c.bf16 %v94, %v87
    %v172 = vpack.c.bf16 %v95, %v88
    %v173 = vpack.c.bf16 %v96, %v89
    %v174 = vpack.c.bf16 %v97, %v90
    %v175 = vpack.c.bf16 %v105, %v98
    %v176 = vpack.c.bf16 %v106, %v99
    %v177 = vpack.c.bf16 %v107, %v100
    %v178 = vpack.c.bf16 %v108, %v101
    %v179 = vpack.c.bf16 %v109, %v102
    %v180 = vpack.c.bf16 %v110, %v103
    %v181 = vpack.c.bf16 %v111, %v104
    %v182 = vpack.c.bf16 %v119, %v112
    %v183 = vpack.c.bf16 %v120, %v113
    %v184 = vpack.c.bf16 %v121, %v114
    %v185 = vpack.c.bf16 %v122, %v115
    %v186 = vpack.c.bf16 %v123, %v116
    %v187 = vpack.c.bf16 %v124, %v117
    %v188 = vpack.c.bf16 %v125, %v118
    %v189 = vpack.c.bf16 %v133, %v126
    %v190 = vpack.c.bf16 %v134, %v127
    %v191 = vpack.c.bf16 %v135, %v128
    %v192 = vpack.c.bf16 %v136, %v129
    %v193 = vpack.c.bf16 %v137, %v130
    %v194 = vpack.c.bf16 %v138, %v131
    %v195 = vpack.c.bf16 %v139, %v132
    %v196 = vld [vmem:[%s1] sm:$0xf]
    %v197 = vld [vmem:[%s1 + $0x4] sm:$0xf]
    %v198 = vld [vmem:[%s1 + $0x8] sm:$0xf]
    %v199 = vld [vmem:[%s1 + $0xc] sm:$0xf]
    %v200 = vld [vmem:[%s1 + $0x10] sm:$0xf]
    %v201 = vld [vmem:[%s1 + $0x14] sm:$0xf]
    %v202 = vld [vmem:[%s1 + $0x18] sm:$0xf]
    %v203 = vld [vmem:[%s1 + $0x1c] sm:$0xf]
    %v204 = vld [vmem:[%s1 + $0x20] sm:$0xf]
    %v205 = vld [vmem:[%s1 + $0x24] sm:$0xf]
    %v206 = vld [vmem:[%s1 + $0x28] sm:$0xf]
    %v207 = vld [vmem:[%s1 + $0x2c] sm:$0xf]
    %v208 = vld [vmem:[%s1 + $0x30] sm:$0xf]
    %v209 = vld [vmem:[%s1 + $0x34] sm:$0xf]
    %v210 = vld [vmem:[%s1 + $0x38] sm:$0xf]
    %v211 = vld [vmem:[%s1 + $0x3c] sm:$0xf]
    %v212 = vld [vmem:[%s1 + $0x40] sm:$0xf]
    %v213 = vld [vmem:[%s1 + $0x44] sm:$0xf]
    %v214 = vld [vmem:[%s1 + $0x48] sm:$0xf]
    %v215 = vld [vmem:[%s1 + $0x4c] sm:$0xf]
    %v216 = vld [vmem:[%s1 + $0x50] sm:$0xf]
    %v217 = vld [vmem:[%s1 + $0x54] sm:$0xf]
    %v218 = vld [vmem:[%s1 + $0x58] sm:$0xf]
    %v219 = vld [vmem:[%s1 + $0x5c] sm:$0xf]
    %v220 = vld [vmem:[%s1 + $0x60] sm:$0xf]
    %v221 = vld [vmem:[%s1 + $0x64] sm:$0xf]
    %v222 = vld [vmem:[%s1 + $0x68] sm:$0xf]
    %v223 = vld [vmem:[%s1 + $0x6c] sm:$0xf]
    %v224 = vld [vmem:[%s1 + $0x70] sm:$0xf]
    %v225 = vld [vmem:[%s1 + $0x74] sm:$0xf]
    %v226 = vld [vmem:[%s1 + $0x78] sm:$0xf]
    %v227 = vld [vmem:[%s1 + $0x7c] sm:$0xf]
    %v228 = vld [vmem:[%s1 + $0x80] sm:$0xf]
    %v229 = vld [vmem:[%s1 + $0x84] sm:$0xf]
    %v230 = vld [vmem:[%s1 + $0x88] sm:$0xf]
    %v231 = vld [vmem:[%s1 + $0x8c] sm:$0xf]
    %v232 = vld [vmem:[%s1 + $0x90] sm:$0xf]
    %v233 = vld [vmem:[%s1 + $0x94] sm:$0xf]
    %v234 = vld [vmem:[%s1 + $0x98] sm:$0xf]
    %v235 = vld [vmem:[%s1 + $0x9c] sm:$0xf]
    %v236 = vld [vmem:[%s1 + $0xa0] sm:$0xf]
    %v237 = vld [vmem:[%s1 + $0xa4] sm:$0xf]
    %v238 = vld [vmem:[%s1 + $0xa8] sm:$0xf]
    %v239 = vld [vmem:[%s1 + $0xac] sm:$0xf]
    %v240 = vld [vmem:[%s1 + $0xb0] sm:$0xf]
    %v241 = vld [vmem:[%s1 + $0xb4] sm:$0xf]
    %v242 = vld [vmem:[%s1 + $0xb8] sm:$0xf]
    %v243 = vld [vmem:[%s1 + $0xbc] sm:$0xf]
    %v244 = vld [vmem:[%s1 + $0xc0] sm:$0xf]
    %v245 = vld [vmem:[%s1 + $0xc4] sm:$0xf]
    %v246 = vld [vmem:[%s1 + $0xc8] sm:$0xf]
    %v247 = vld [vmem:[%s1 + $0xcc] sm:$0xf]
    %v248 = vld [vmem:[%s1 + $0xd0] sm:$0xf]
    %v249 = vld [vmem:[%s1 + $0xd4] sm:$0xf]
    %v250 = vld [vmem:[%s1 + $0xd8] sm:$0xf]
    %v251 = vld [vmem:[%s1 + $0xdc] sm:$0xf]
    %v252 = vld [vmem:[%s1 + $0xe0] sm:$0xf]
    %v253 = vld [vmem:[%s1 + $0xe4] sm:$0xf]
    %v254 = vld [vmem:[%s1 + $0xe8] sm:$0xf]
    %v255 = vld [vmem:[%s1 + $0xec] sm:$0xf]
    %v256 = vld [vmem:[%s1 + $0xf0] sm:$0xf]
    %v257 = vld [vmem:[%s1 + $0xf4] sm:$0xf]
    %v258 = vld [vmem:[%s1 + $0xf8] sm:$0xf]
    %v259 = vld [vmem:[%s1 + $0xfc] sm:$0xf]
    %v260 = vld [vmem:[%s1 + $0x100] sm:$0xf]
    %v261 = vld [vmem:[%s1 + $0x104] sm:$0xf]
    %v262 = vld [vmem:[%s1 + $0x108] sm:$0xf]
    %v263 = vld [vmem:[%s1 + $0x10c] sm:$0xf]
    %v264 = vld [vmem:[%s1 + $0x110] sm:$0xf]
    %v265 = vld [vmem:[%s1 + $0x114] sm:$0xf]
    %v266 = vld [vmem:[%s1 + $0x118] sm:$0xf]
    %v267 = vld [vmem:[%s1 + $0x11c] sm:$0xf]
    %v268 = vld [vmem:[%s1 + $0x120] sm:$0xf]
    %v269 = vld [vmem:[%s1 + $0x124] sm:$0xf]
    %v270 = vld [vmem:[%s1 + $0x128] sm:$0xf]
    %v271 = vld [vmem:[%s1 + $0x12c] sm:$0xf]
    %v272 = vld [vmem:[%s1 + $0x130] sm:$0xf]
    %v273 = vld [vmem:[%s1 + $0x134] sm:$0xf]
    %v274 = vld [vmem:[%s1 + $0x138] sm:$0xf]
    %v275 = vld [vmem:[%s1 + $0x13c] sm:$0xf]
    %v276 = vld [vmem:[%s1 + $0x140] sm:$0xf]
    %v277 = vld [vmem:[%s1 + $0x144] sm:$0xf]
    %v278 = vld [vmem:[%s1 + $0x148] sm:$0xf]
    %v279 = vld [vmem:[%s1 + $0x14c] sm:$0xf]
    %v280 = vld [vmem:[%s1 + $0x150] sm:$0xf]
    %v281 = vld [vmem:[%s1 + $0x154] sm:$0xf]
    %v282 = vld [vmem:[%s1 + $0x158] sm:$0xf]
    %v283 = vld [vmem:[%s1 + $0x15c] sm:$0xf]
    %v284 = vld [vmem:[%s1 + $0x160] sm:$0xf]
    %v285 = vld [vmem:[%s1 + $0x164] sm:$0xf]
    %v286 = vld [vmem:[%s1 + $0x168] sm:$0xf]
    %v287 = vld [vmem:[%s1 + $0x16c] sm:$0xf]
    %v288 = vld [vmem:[%s1 + $0x170] sm:$0xf]
    %v289 = vld [vmem:[%s1 + $0x174] sm:$0xf]
    %v290 = vld [vmem:[%s1 + $0x178] sm:$0xf]
    %v291 = vld [vmem:[%s1 + $0x17c] sm:$0xf]
    %v292 = vld [vmem:[%s1 + $0x180] sm:$0xf]
    %v293 = vld [vmem:[%s1 + $0x184] sm:$0xf]
    %v294 = vld [vmem:[%s2] sm:$0x1]
    %v296 = vperm.slane %v294, 0
    %v396 = vunpack.c.l.b16 %v196
    %v397 = vunpack.c.l.b16 %v197
    %v398 = vunpack.c.l.b16 %v198
    %v399 = vunpack.c.l.b16 %v199
    %v400 = vunpack.c.l.b16 %v200
    %v401 = vunpack.c.l.b16 %v201
    %v402 = vunpack.c.l.b16 %v202
    %v403 = vunpack.c.l.b16 %v203
    %v404 = vunpack.c.l.b16 %v204
    %v405 = vunpack.c.l.b16 %v205
    %v406 = vunpack.c.l.b16 %v206
    %v407 = vunpack.c.l.b16 %v207
    %v408 = vunpack.c.l.b16 %v208
    %v409 = vunpack.c.l.b16 %v209
    %v410 = vunpack.c.l.b16 %v210
    %v411 = vunpack.c.l.b16 %v211
    %v412 = vunpack.c.l.b16 %v212
    %v413 = vunpack.c.l.b16 %v213
    %v414 = vunpack.c.l.b16 %v214
    %v415 = vunpack.c.l.b16 %v215
    %v416 = vunpack.c.l.b16 %v216
    %v417 = vunpack.c.l.b16 %v217
    %v418 = vunpack.c.l.b16 %v218
    %v419 = vunpack.c.l.b16 %v219
    %v420 = vunpack.c.l.b16 %v220
    %v421 = vunpack.c.l.b16 %v221
    %v422 = vunpack.c.l.b16 %v222
    %v423 = vunpack.c.l.b16 %v223
    %v424 = vunpack.c.l.b16 %v224
    %v425 = vunpack.c.l.b16 %v225
    %v426 = vunpack.c.l.b16 %v226
    %v427 = vunpack.c.l.b16 %v227
    %v428 = vunpack.c.l.b16 %v228
    %v429 = vunpack.c.l.b16 %v229
    %v430 = vunpack.c.l.b16 %v230
    %v431 = vunpack.c.l.b16 %v231
    %v432 = vunpack.c.l.b16 %v232
    %v433 = vunpack.c.l.b16 %v233
    %v434 = vunpack.c.l.b16 %v234
    %v435 = vunpack.c.l.b16 %v235
    %v436 = vunpack.c.l.b16 %v236
    %v437 = vunpack.c.l.b16 %v237
    %v438 = vunpack.c.l.b16 %v238
    %v439 = vunpack.c.l.b16 %v239
    %v440 = vunpack.c.l.b16 %v240
    %v441 = vunpack.c.l.b16 %v241
    %v442 = vunpack.c.l.b16 %v242
    %v443 = vunpack.c.l.b16 %v243
    %v444 = vunpack.c.l.b16 %v244
    %v445 = vunpack.c.l.b16 %v245
    %v446 = vunpack.c.l.b16 %v246
    %v447 = vunpack.c.l.b16 %v247
    %v448 = vunpack.c.l.b16 %v248
    %v449 = vunpack.c.l.b16 %v249
    %v450 = vunpack.c.l.b16 %v250
    %v451 = vunpack.c.l.b16 %v251
    %v452 = vunpack.c.l.b16 %v252
    %v453 = vunpack.c.l.b16 %v253
    %v454 = vunpack.c.l.b16 %v254
    %v455 = vunpack.c.l.b16 %v255
    %v456 = vunpack.c.l.b16 %v256
    %v457 = vunpack.c.l.b16 %v257
    %v458 = vunpack.c.l.b16 %v258
    %v459 = vunpack.c.l.b16 %v259
    %v460 = vunpack.c.l.b16 %v260
    %v461 = vunpack.c.l.b16 %v261
    %v462 = vunpack.c.l.b16 %v262
    %v463 = vunpack.c.l.b16 %v263
    %v464 = vunpack.c.l.b16 %v264
    %v465 = vunpack.c.l.b16 %v265
    %v466 = vunpack.c.l.b16 %v266
    %v467 = vunpack.c.l.b16 %v267
    %v468 = vunpack.c.l.b16 %v268
    %v469 = vunpack.c.l.b16 %v269
    %v470 = vunpack.c.l.b16 %v270
    %v471 = vunpack.c.l.b16 %v271
    %v472 = vunpack.c.l.b16 %v272
    %v473 = vunpack.c.l.b16 %v273
    %v474 = vunpack.c.l.b16 %v274
    %v475 = vunpack.c.l.b16 %v275
    %v476 = vunpack.c.l.b16 %v276
    %v477 = vunpack.c.l.b16 %v277
    %v478 = vunpack.c.l.b16 %v278
    %v479 = vunpack.c.l.b16 %v279
    %v480 = vunpack.c.l.b16 %v280
    %v481 = vunpack.c.l.b16 %v281
    %v482 = vunpack.c.l.b16 %v282
    %v483 = vunpack.c.l.b16 %v283
    %v484 = vunpack.c.l.b16 %v284
    %v485 = vunpack.c.l.b16 %v285
    %v486 = vunpack.c.l.b16 %v286
    %v487 = vunpack.c.l.b16 %v287
    %v488 = vunpack.c.l.b16 %v288
    %v489 = vunpack.c.l.b16 %v289
    %v490 = vunpack.c.l.b16 %v290
    %v491 = vunpack.c.l.b16 %v291
    %v492 = vunpack.c.l.b16 %v292
    %v493 = vunpack.c.l.b16 %v293
    %v494 = vpack.c.b16 %v397, %v396
    %v495 = vpack.c.b16 %v399, %v398
    %v496 = vpack.c.b16 %v401, %v400
    %v497 = vpack.c.b16 %v403, %v402
    %v498 = vpack.c.b16 %v405, %v404
    %v499 = vpack.c.b16 %v407, %v406
    %v500 = vpack.c.b16 %v409, %v408
    %v501 = vpack.c.b16 %v411, %v410
    %v502 = vpack.c.b16 %v413, %v412
    %v503 = vpack.c.b16 %v415, %v414
    %v504 = vpack.c.b16 %v417, %v416
    %v505 = vpack.c.b16 %v419, %v418
    %v506 = vpack.c.b16 %v421, %v420
    %v507 = vpack.c.b16 %v423, %v422
    %v508 = vpack.c.b16 %v425, %v424
    %v509 = vpack.c.b16 %v427, %v426
    %v510 = vpack.c.b16 %v429, %v428
    %v511 = vpack.c.b16 %v431, %v430
    %v512 = vpack.c.b16 %v433, %v432
    %v513 = vpack.c.b16 %v435, %v434
    %v514 = vpack.c.b16 %v437, %v436
    %v515 = vpack.c.b16 %v439, %v438
    %v516 = vpack.c.b16 %v441, %v440
    %v517 = vpack.c.b16 %v443, %v442
    %v518 = vpack.c.b16 %v445, %v444
    %v519 = vpack.c.b16 %v447, %v446
    %v520 = vpack.c.b16 %v449, %v448
    %v521 = vpack.c.b16 %v451, %v450
    %v522 = vpack.c.b16 %v453, %v452
    %v523 = vpack.c.b16 %v455, %v454
    %v524 = vpack.c.b16 %v457, %v456
    %v525 = vpack.c.b16 %v459, %v458
    %v526 = vpack.c.b16 %v461, %v460
    %v527 = vpack.c.b16 %v463, %v462
    %v528 = vpack.c.b16 %v465, %v464
    %v529 = vpack.c.b16 %v467, %v466
    %v530 = vpack.c.b16 %v469, %v468
    %v531 = vpack.c.b16 %v471, %v470
    %v532 = vpack.c.b16 %v473, %v472
    %v533 = vpack.c.b16 %v475, %v474
    %v534 = vpack.c.b16 %v477, %v476
    %v535 = vpack.c.b16 %v479, %v478
    %v536 = vpack.c.b16 %v481, %v480
    %v537 = vpack.c.b16 %v483, %v482
    %v538 = vpack.c.b16 %v485, %v484
    %v539 = vpack.c.b16 %v487, %v486
    %v540 = vpack.c.b16 %v489, %v488
    %v541 = vpack.c.b16 %v491, %v490
    %v542 = vpack.c.b16 %v493, %v492
    %vm592 = vcmask 130048
    %v594 = vsel %vm592, %v146, 0
    %v597 = vsel %vm592, %v153, 0
    %v600 = vsel %vm592, %v160, 0
    %v603 = vsel %vm592, %v167, 0
    %v606 = vsel %vm592, %v174, 0
    %v609 = vsel %vm592, %v181, 0
    %v612 = vsel %vm592, %v188, 0
    %v615 = vsel %vm592, %v195, 0
    %617 = vmatpush.bf16.msra.mxu0 %v501
    %618 = vmatpush.bf16.msra.mxu0 %v500
    %619 = vmatpush.bf16.msra.mxu0 %v499
    %620 = vmatpush.bf16.msra.mxu0 %v498
    %621 = vmatpush.bf16.msra.mxu0 %v497
    %622 = vmatpush.bf16.msra.mxu0 %v496
    %623 = vmatpush.bf16.msra.mxu0 %v495
    %624 = vmatpush.bf16.msra.mxu0 %v494
    %625 = vmatmul.bf16.gmra.mxu0 %v140
    %v626 = vpop.f32.mrf.mxu0
    %v627 = vadd.f32 %v296, %v626
    %v628 = vpop.f32.mrf.mxu0
    %v629 = vadd.f32 %v296, %v628
    %630 = vmatmul.bf16.gmra.mxu0 %v147
    %v631 = vpop.f32.mrf.mxu0
    %v632 = vadd.f32 %v296, %v631
    %v633 = vpop.f32.mrf.mxu0
    %v634 = vadd.f32 %v296, %v633
    %635 = vmatmul.bf16.gmra.mxu0 %v154
    %v636 = vpop.f32.mrf.mxu0
    %v637 = vadd.f32 %v296, %v636
    %v638 = vpop.f32.mrf.mxu0
    %v639 = vadd.f32 %v296, %v638
    %640 = vmatmul.bf16.gmra.mxu0 %v161
    %v641 = vpop.f32.mrf.mxu0
    %v642 = vadd.f32 %v296, %v641
    %v643 = vpop.f32.mrf.mxu0
    %v644 = vadd.f32 %v296, %v643
    %645 = vmatmul.bf16.gmra.mxu0 %v168
    %v646 = vpop.f32.mrf.mxu0
    %v647 = vadd.f32 %v296, %v646
    %v648 = vpop.f32.mrf.mxu0
    %v649 = vadd.f32 %v296, %v648
    %650 = vmatmul.bf16.gmra.mxu0 %v175
    %v651 = vpop.f32.mrf.mxu0
    %v652 = vadd.f32 %v296, %v651
    %v653 = vpop.f32.mrf.mxu0
    %v654 = vadd.f32 %v296, %v653
    %655 = vmatmul.bf16.gmra.mxu0 %v182
    %v656 = vpop.f32.mrf.mxu0
    %v657 = vadd.f32 %v296, %v656
    %v658 = vpop.f32.mrf.mxu0
    %v659 = vadd.f32 %v296, %v658
    %660 = vmatmul.bf16.gmra.mxu0 %v189
    %v661 = vpop.f32.mrf.mxu0
    %v662 = vadd.f32 %v296, %v661
    %v663 = vpop.f32.mrf.mxu0
    %v664 = vadd.f32 %v296, %v663
    %665 = vdwg.mxu0
    %666 = vmatpush.bf16.msra.mxu0 %v509
    %667 = vmatpush.bf16.msra.mxu0 %v508
    %668 = vmatpush.bf16.msra.mxu0 %v507
    %669 = vmatpush.bf16.msra.mxu0 %v506
    %670 = vmatpush.bf16.msra.mxu0 %v505
    %671 = vmatpush.bf16.msra.mxu0 %v504
    %672 = vmatpush.bf16.msra.mxu0 %v503
    %673 = vmatpush.bf16.msra.mxu0 %v502
    %674 = vmatmul.bf16.gmra.mxu0 %v141
    %v675 = vpop.f32.mrf.mxu0
    %v676 = vadd.f32 %v627, %v675
    %v677 = vpop.f32.mrf.mxu0
    %v678 = vadd.f32 %v629, %v677
    %679 = vmatmul.bf16.gmra.mxu0 %v148
    %v680 = vpop.f32.mrf.mxu0
    %v681 = vadd.f32 %v632, %v680
    %v682 = vpop.f32.mrf.mxu0
    %v683 = vadd.f32 %v634, %v682
    %684 = vmatmul.bf16.gmra.mxu0 %v155
    %v685 = vpop.f32.mrf.mxu0
    %v686 = vadd.f32 %v637, %v685
    %v687 = vpop.f32.mrf.mxu0
    %v688 = vadd.f32 %v639, %v687
    %689 = vmatmul.bf16.gmra.mxu0 %v162
    %v690 = vpop.f32.mrf.mxu0
    %v691 = vadd.f32 %v642, %v690
    %v692 = vpop.f32.mrf.mxu0
    %v693 = vadd.f32 %v644, %v692
    %694 = vmatmul.bf16.gmra.mxu0 %v169
    %v695 = vpop.f32.mrf.mxu0
    %v696 = vadd.f32 %v647, %v695
    %v697 = vpop.f32.mrf.mxu0
    %v698 = vadd.f32 %v649, %v697
    %699 = vmatmul.bf16.gmra.mxu0 %v176
    %v700 = vpop.f32.mrf.mxu0
    %v701 = vadd.f32 %v652, %v700
    %v702 = vpop.f32.mrf.mxu0
    %v703 = vadd.f32 %v654, %v702
    %704 = vmatmul.bf16.gmra.mxu0 %v183
    %v705 = vpop.f32.mrf.mxu0
    %v706 = vadd.f32 %v657, %v705
    %v707 = vpop.f32.mrf.mxu0
    %v708 = vadd.f32 %v659, %v707
    %709 = vmatmul.bf16.gmra.mxu0 %v190
    %v710 = vpop.f32.mrf.mxu0
    %v711 = vadd.f32 %v662, %v710
    %v712 = vpop.f32.mrf.mxu0
    %v713 = vadd.f32 %v664, %v712
    %714 = vdwg.mxu0
    %715 = vmatpush.bf16.msra.mxu0 %v517
    %716 = vmatpush.bf16.msra.mxu0 %v516
    %717 = vmatpush.bf16.msra.mxu0 %v515
    %718 = vmatpush.bf16.msra.mxu0 %v514
    %719 = vmatpush.bf16.msra.mxu0 %v513
    %720 = vmatpush.bf16.msra.mxu0 %v512
    %721 = vmatpush.bf16.msra.mxu0 %v511
    %722 = vmatpush.bf16.msra.mxu0 %v510
    %723 = vmatmul.bf16.gmra.mxu0 %v142
    %v724 = vpop.f32.mrf.mxu0
    %v725 = vadd.f32 %v676, %v724
    %v726 = vpop.f32.mrf.mxu0
    %v727 = vadd.f32 %v678, %v726
    %728 = vmatmul.bf16.gmra.mxu0 %v149
    %v729 = vpop.f32.mrf.mxu0
    %v730 = vadd.f32 %v681, %v729
    %v731 = vpop.f32.mrf.mxu0
    %v732 = vadd.f32 %v683, %v731
    %733 = vmatmul.bf16.gmra.mxu0 %v156
    %v734 = vpop.f32.mrf.mxu0
    %v735 = vadd.f32 %v686, %v734
    %v736 = vpop.f32.mrf.mxu0
    %v737 = vadd.f32 %v688, %v736
    %738 = vmatmul.bf16.gmra.mxu0 %v163
    %v739 = vpop.f32.mrf.mxu0
    %v740 = vadd.f32 %v691, %v739
    %v741 = vpop.f32.mrf.mxu0
    %v742 = vadd.f32 %v693, %v741
    %743 = vmatmul.bf16.gmra.mxu0 %v170
    %v744 = vpop.f32.mrf.mxu0
    %v745 = vadd.f32 %v696, %v744
    %v746 = vpop.f32.mrf.mxu0
    %v747 = vadd.f32 %v698, %v746
    %748 = vmatmul.bf16.gmra.mxu0 %v177
    %v749 = vpop.f32.mrf.mxu0
    %v750 = vadd.f32 %v701, %v749
    %v751 = vpop.f32.mrf.mxu0
    %v752 = vadd.f32 %v703, %v751
    %753 = vmatmul.bf16.gmra.mxu0 %v184
    %v754 = vpop.f32.mrf.mxu0
    %v755 = vadd.f32 %v706, %v754
    %v756 = vpop.f32.mrf.mxu0
    %v757 = vadd.f32 %v708, %v756
    %758 = vmatmul.bf16.gmra.mxu0 %v191
    %v759 = vpop.f32.mrf.mxu0
    %v760 = vadd.f32 %v711, %v759
    %v761 = vpop.f32.mrf.mxu0
    %v762 = vadd.f32 %v713, %v761
    %763 = vdwg.mxu0
    %764 = vmatpush.bf16.msra.mxu0 %v525
    %765 = vmatpush.bf16.msra.mxu0 %v524
    %766 = vmatpush.bf16.msra.mxu0 %v523
    %767 = vmatpush.bf16.msra.mxu0 %v522
    %768 = vmatpush.bf16.msra.mxu0 %v521
    %769 = vmatpush.bf16.msra.mxu0 %v520
    %770 = vmatpush.bf16.msra.mxu0 %v519
    %771 = vmatpush.bf16.msra.mxu0 %v518
    %772 = vmatmul.bf16.gmra.mxu0 %v143
    %v773 = vpop.f32.mrf.mxu0
    %v774 = vadd.f32 %v725, %v773
    %v775 = vpop.f32.mrf.mxu0
    %v776 = vadd.f32 %v727, %v775
    %777 = vmatmul.bf16.gmra.mxu0 %v150
    %v778 = vpop.f32.mrf.mxu0
    %v779 = vadd.f32 %v730, %v778
    %v780 = vpop.f32.mrf.mxu0
    %v781 = vadd.f32 %v732, %v780
    %782 = vmatmul.bf16.gmra.mxu0 %v157
    %v783 = vpop.f32.mrf.mxu0
    %v784 = vadd.f32 %v735, %v783
    %v785 = vpop.f32.mrf.mxu0
    %v786 = vadd.f32 %v737, %v785
    %787 = vmatmul.bf16.gmra.mxu0 %v164
    %v788 = vpop.f32.mrf.mxu0
    %v789 = vadd.f32 %v740, %v788
    %v790 = vpop.f32.mrf.mxu0
    %v791 = vadd.f32 %v742, %v790
    %792 = vmatmul.bf16.gmra.mxu0 %v171
    %v793 = vpop.f32.mrf.mxu0
    %v794 = vadd.f32 %v745, %v793
    %v795 = vpop.f32.mrf.mxu0
    %v796 = vadd.f32 %v747, %v795
    %797 = vmatmul.bf16.gmra.mxu0 %v178
    %v798 = vpop.f32.mrf.mxu0
    %v799 = vadd.f32 %v750, %v798
    %v800 = vpop.f32.mrf.mxu0
    %v801 = vadd.f32 %v752, %v800
    %802 = vmatmul.bf16.gmra.mxu0 %v185
    %v803 = vpop.f32.mrf.mxu0
    %v804 = vadd.f32 %v755, %v803
    %v805 = vpop.f32.mrf.mxu0
    %v806 = vadd.f32 %v757, %v805
    %807 = vmatmul.bf16.gmra.mxu0 %v192
    %v808 = vpop.f32.mrf.mxu0
    %v809 = vadd.f32 %v760, %v808
    %v810 = vpop.f32.mrf.mxu0
    %v811 = vadd.f32 %v762, %v810
    %812 = vdwg.mxu0
    %813 = vmatpush.bf16.msra.mxu0 %v533
    %814 = vmatpush.bf16.msra.mxu0 %v532
    %815 = vmatpush.bf16.msra.mxu0 %v531
    %816 = vmatpush.bf16.msra.mxu0 %v530
    %817 = vmatpush.bf16.msra.mxu0 %v529
    %818 = vmatpush.bf16.msra.mxu0 %v528
    %819 = vmatpush.bf16.msra.mxu0 %v527
    %820 = vmatpush.bf16.msra.mxu0 %v526
    %821 = vmatmul.bf16.gmra.mxu0 %v144
    %v822 = vpop.f32.mrf.mxu0
    %v823 = vadd.f32 %v774, %v822
    %v824 = vpop.f32.mrf.mxu0
    %v825 = vadd.f32 %v776, %v824
    %826 = vmatmul.bf16.gmra.mxu0 %v151
    %v827 = vpop.f32.mrf.mxu0
    %v828 = vadd.f32 %v779, %v827
    %v829 = vpop.f32.mrf.mxu0
    %v830 = vadd.f32 %v781, %v829
    %831 = vmatmul.bf16.gmra.mxu0 %v158
    %v832 = vpop.f32.mrf.mxu0
    %v833 = vadd.f32 %v784, %v832
    %v834 = vpop.f32.mrf.mxu0
    %v835 = vadd.f32 %v786, %v834
    %836 = vmatmul.bf16.gmra.mxu0 %v165
    %v837 = vpop.f32.mrf.mxu0
    %v838 = vadd.f32 %v789, %v837
    %v839 = vpop.f32.mrf.mxu0
    %v840 = vadd.f32 %v791, %v839
    %841 = vmatmul.bf16.gmra.mxu0 %v172
    %v842 = vpop.f32.mrf.mxu0
    %v843 = vadd.f32 %v794, %v842
    %v844 = vpop.f32.mrf.mxu0
    %v845 = vadd.f32 %v796, %v844
    %846 = vmatmul.bf16.gmra.mxu0 %v179
    %v847 = vpop.f32.mrf.mxu0
    %v848 = vadd.f32 %v799, %v847
    %v849 = vpop.f32.mrf.mxu0
    %v850 = vadd.f32 %v801, %v849
    %851 = vmatmul.bf16.gmra.mxu0 %v186
    %v852 = vpop.f32.mrf.mxu0
    %v853 = vadd.f32 %v804, %v852
    %v854 = vpop.f32.mrf.mxu0
    %v855 = vadd.f32 %v806, %v854
    %856 = vmatmul.bf16.gmra.mxu0 %v193
    %v857 = vpop.f32.mrf.mxu0
    %v858 = vadd.f32 %v809, %v857
    %v859 = vpop.f32.mrf.mxu0
    %v860 = vadd.f32 %v811, %v859
    %861 = vdwg.mxu0
    %862 = vmatpush.bf16.msra.mxu0 %v541
    %863 = vmatpush.bf16.msra.mxu0 %v540
    %864 = vmatpush.bf16.msra.mxu0 %v539
    %865 = vmatpush.bf16.msra.mxu0 %v538
    %866 = vmatpush.bf16.msra.mxu0 %v537
    %867 = vmatpush.bf16.msra.mxu0 %v536
    %868 = vmatpush.bf16.msra.mxu0 %v535
    %869 = vmatpush.bf16.msra.mxu0 %v534
    %870 = vmatmul.bf16.gmra.mxu0 %v145
    %v871 = vpop.f32.mrf.mxu0
    %v872 = vadd.f32 %v823, %v871
    %v873 = vpop.f32.mrf.mxu0
    %v874 = vadd.f32 %v825, %v873
    %875 = vmatmul.bf16.gmra.mxu0 %v152
    %v876 = vpop.f32.mrf.mxu0
    %v877 = vadd.f32 %v828, %v876
    %v878 = vpop.f32.mrf.mxu0
    %v879 = vadd.f32 %v830, %v878
    %880 = vmatmul.bf16.gmra.mxu0 %v159
    %v881 = vpop.f32.mrf.mxu0
    %v882 = vadd.f32 %v833, %v881
    %v883 = vpop.f32.mrf.mxu0
    %v884 = vadd.f32 %v835, %v883
    %885 = vmatmul.bf16.gmra.mxu0 %v166
    %v886 = vpop.f32.mrf.mxu0
    %v887 = vadd.f32 %v838, %v886
    %v888 = vpop.f32.mrf.mxu0
    %v889 = vadd.f32 %v840, %v888
    %890 = vmatmul.bf16.gmra.mxu0 %v173
    %v891 = vpop.f32.mrf.mxu0
    %v892 = vadd.f32 %v843, %v891
    %v893 = vpop.f32.mrf.mxu0
    %v894 = vadd.f32 %v845, %v893
    %895 = vmatmul.bf16.gmra.mxu0 %v180
    %v896 = vpop.f32.mrf.mxu0
    %v897 = vadd.f32 %v848, %v896
    %v898 = vpop.f32.mrf.mxu0
    %v899 = vadd.f32 %v850, %v898
    %900 = vmatmul.bf16.gmra.mxu0 %v187
    %v901 = vpop.f32.mrf.mxu0
    %v902 = vadd.f32 %v853, %v901
    %v903 = vpop.f32.mrf.mxu0
    %v904 = vadd.f32 %v855, %v903
    %905 = vmatmul.bf16.gmra.mxu0 %v194
    %v906 = vpop.f32.mrf.mxu0
    %v907 = vadd.f32 %v858, %v906
    %v908 = vpop.f32.mrf.mxu0
    %v909 = vadd.f32 %v860, %v908
    %910 = vdwg.mxu0
    %911 = vmatpush.bf16.msra.mxu0 0
    %912 = vmatpush.bf16.msra.mxu0 0
    %913 = vmatpush.bf16.msra.mxu0 0
    %914 = vmatpush.bf16.msra.mxu0 0
    %915 = vmatpush.bf16.msra.mxu0 0
    %916 = vmatpush.bf16.msra.mxu0 0
    %917 = vmatpush.bf16.msra.mxu0 0
    %918 = vmatpush.bf16.msra.mxu0 %v542
    %919 = vmatmul.bf16.gmra.mxu0 %v594
    %v920 = vpop.f32.mrf.mxu0
    %v921 = vadd.f32 %v872, %v920
    %v922 = vpop.f32.mrf.mxu0
    %v923 = vadd.f32 %v874, %v922
    %924 = vmatmul.bf16.gmra.mxu0 %v597
    %v925 = vpop.f32.mrf.mxu0
    %v926 = vadd.f32 %v877, %v925
    %v927 = vpop.f32.mrf.mxu0
    %v928 = vadd.f32 %v879, %v927
    %929 = vmatmul.bf16.gmra.mxu0 %v600
    %v930 = vpop.f32.mrf.mxu0
    %v931 = vadd.f32 %v882, %v930
    %v932 = vpop.f32.mrf.mxu0
    %v933 = vadd.f32 %v884, %v932
    %934 = vmatmul.bf16.gmra.mxu0 %v603
    %v935 = vpop.f32.mrf.mxu0
    %v936 = vadd.f32 %v887, %v935
    %v937 = vpop.f32.mrf.mxu0
    %v938 = vadd.f32 %v889, %v937
    %939 = vmatmul.bf16.gmra.mxu0 %v606
    %v940 = vpop.f32.mrf.mxu0
    %v941 = vadd.f32 %v892, %v940
    %v942 = vpop.f32.mrf.mxu0
    %v943 = vadd.f32 %v894, %v942
    %944 = vmatmul.bf16.gmra.mxu0 %v609
    %v945 = vpop.f32.mrf.mxu0
    %v946 = vadd.f32 %v897, %v945
    %v947 = vpop.f32.mrf.mxu0
    %v948 = vadd.f32 %v899, %v947
    %949 = vmatmul.bf16.gmra.mxu0 %v612
    %v950 = vpop.f32.mrf.mxu0
    %v951 = vadd.f32 %v902, %v950
    %v952 = vpop.f32.mrf.mxu0
    %v953 = vadd.f32 %v904, %v952
    %954 = vmatmul.bf16.gmra.mxu0 %v615
    %v955 = vpop.f32.mrf.mxu0
    %v956 = vadd.f32 %v907, %v955
    %v957 = vpop.f32.mrf.mxu0
    %v958 = vadd.f32 %v909, %v957
    %959 = vdwg.mxu0
    %v960 = vpack.c.bf16 %v923, %v921
    %v961 = vpack.c.bf16 %v928, %v926
    %v962 = vpack.c.bf16 %v933, %v931
    %v963 = vpack.c.bf16 %v938, %v936
    %v964 = vpack.c.bf16 %v943, %v941
    %v965 = vpack.c.bf16 %v948, %v946
    %v966 = vpack.c.bf16 %v953, %v951
    %v967 = vpack.c.bf16 %v958, %v956
    %v968 = vld [vmem:[%s3] sm:$0xff]
    %v969 = vld [vmem:[%s3 + $0x8] sm:$0xff]
    %v970 = vld [vmem:[%s3 + $0x10] sm:$0xff]
    %v971 = vld [vmem:[%s3 + $0x18] sm:$0xff]
    %v972 = vld [vmem:[%s3 + $0x20] sm:$0xff]
    %v973 = vld [vmem:[%s3 + $0x28] sm:$0xff]
    %v974 = vld [vmem:[%s3 + $0x30] sm:$0xff]
    %v975 = vld [vmem:[%s3 + $0x38] sm:$0xff]
    %v976 = vld [vmem:[%s3 + $0x40] sm:$0xff]
    %v977 = vld [vmem:[%s3 + $0x48] sm:$0xff]
    %v978 = vld [vmem:[%s3 + $0x50] sm:$0xff]
    %v979 = vld [vmem:[%s3 + $0x58] sm:$0xff]
    %v980 = vld [vmem:[%s3 + $0x60] sm:$0xff]
    %v981 = vld [vmem:[%s3 + $0x68] sm:$0xff]
    %v982 = vld [vmem:[%s3 + $0x70] sm:$0xff]
    %v983 = vld [vmem:[%s3 + $0x78] sm:$0xff]
    %v984 = vld [vmem:[%s4] sm:$0x3]
    %v986 = vperm.slane %v984, 0
    %v987 = vperm.slane %v984, 1
    %v1006 = vunpack.c.l.b16 %v968
    %v1007 = vunpack.c.h.b16 %v968
    %v1008 = vunpack.c.l.b16 %v969
    %v1009 = vunpack.c.h.b16 %v969
    %v1010 = vunpack.c.l.b16 %v970
    %v1011 = vunpack.c.h.b16 %v970
    %v1012 = vunpack.c.l.b16 %v971
    %v1013 = vunpack.c.h.b16 %v971
    %v1014 = vunpack.c.l.b16 %v972
    %v1015 = vunpack.c.h.b16 %v972
    %v1016 = vunpack.c.l.b16 %v973
    %v1017 = vunpack.c.h.b16 %v973
    %v1018 = vunpack.c.l.b16 %v974
    %v1019 = vunpack.c.h.b16 %v974
    %v1020 = vunpack.c.l.b16 %v975
    %v1021 = vunpack.c.h.b16 %v975
    %v1022 = vunpack.c.l.b16 %v976
    %v1023 = vunpack.c.h.b16 %v976
    %v1024 = vunpack.c.l.b16 %v977
    %v1025 = vunpack.c.h.b16 %v977
    %v1026 = vunpack.c.l.b16 %v978
    %v1027 = vunpack.c.h.b16 %v978
    %v1028 = vunpack.c.l.b16 %v979
    %v1029 = vunpack.c.h.b16 %v979
    %v1030 = vunpack.c.l.b16 %v980
    %v1031 = vunpack.c.h.b16 %v980
    %v1032 = vunpack.c.l.b16 %v981
    %v1033 = vunpack.c.h.b16 %v981
    %v1034 = vunpack.c.l.b16 %v982
    %v1035 = vunpack.c.h.b16 %v982
    %v1036 = vunpack.c.l.b16 %v983
    %v1037 = vunpack.c.h.b16 %v983
    %v1038 = vpack.c.b16 %v1008, %v1006
    %v1039 = vpack.c.b16 %v1009, %v1007
    %v1040 = vpack.c.b16 %v1012, %v1010
    %v1041 = vpack.c.b16 %v1013, %v1011
    %v1042 = vpack.c.b16 %v1016, %v1014
    %v1043 = vpack.c.b16 %v1017, %v1015
    %v1044 = vpack.c.b16 %v1020, %v1018
    %v1045 = vpack.c.b16 %v1021, %v1019
    %v1046 = vpack.c.b16 %v1024, %v1022
    %v1047 = vpack.c.b16 %v1025, %v1023
    %v1048 = vpack.c.b16 %v1028, %v1026
    %v1049 = vpack.c.b16 %v1029, %v1027
    %v1050 = vpack.c.b16 %v1032, %v1030
    %v1051 = vpack.c.b16 %v1033, %v1031
    %v1052 = vpack.c.b16 %v1036, %v1034
    %v1053 = vpack.c.b16 %v1037, %v1035
    %1070 = vmatpush.bf16.msra.mxu0 %v1052
    %1071 = vmatpush.bf16.msra.mxu0 %v1050
    %1072 = vmatpush.bf16.msra.mxu0 %v1048
    %1073 = vmatpush.bf16.msra.mxu0 %v1046
    %1074 = vmatpush.bf16.msra.mxu0 %v1044
    %1075 = vmatpush.bf16.msra.mxu0 %v1042
    %1076 = vmatpush.bf16.msra.mxu0 %v1040
    %1077 = vmatpush.bf16.msra.mxu0 %v1038
    %1078 = vmatmul.bf16.gmra.mxu0 %v960
    %v1079 = vpop.f32.mrf.mxu0
    %v1080 = vadd.f32 %v986, %v1079
    %v1081 = vpop.f32.mrf.mxu0
    %v1082 = vadd.f32 %v986, %v1081
    %1083 = vmatmul.bf16.gmra.mxu0 %v961
    %v1084 = vpop.f32.mrf.mxu0
    %v1085 = vadd.f32 %v986, %v1084
    %v1086 = vpop.f32.mrf.mxu0
    %v1087 = vadd.f32 %v986, %v1086
    %1088 = vmatmul.bf16.gmra.mxu0 %v962
    %v1089 = vpop.f32.mrf.mxu0
    %v1090 = vadd.f32 %v986, %v1089
    %v1091 = vpop.f32.mrf.mxu0
    %v1092 = vadd.f32 %v986, %v1091
    %1093 = vmatmul.bf16.gmra.mxu0 %v963
    %v1094 = vpop.f32.mrf.mxu0
    %v1095 = vadd.f32 %v986, %v1094
    %v1096 = vpop.f32.mrf.mxu0
    %v1097 = vadd.f32 %v986, %v1096
    %1098 = vmatmul.bf16.gmra.mxu0 %v964
    %v1099 = vpop.f32.mrf.mxu0
    %v1100 = vadd.f32 %v986, %v1099
    %v1101 = vpop.f32.mrf.mxu0
    %v1102 = vadd.f32 %v986, %v1101
    %1103 = vmatmul.bf16.gmra.mxu0 %v965
    %v1104 = vpop.f32.mrf.mxu0
    %v1105 = vadd.f32 %v986, %v1104
    %v1106 = vpop.f32.mrf.mxu0
    %v1107 = vadd.f32 %v986, %v1106
    %1108 = vmatmul.bf16.gmra.mxu0 %v966
    %v1109 = vpop.f32.mrf.mxu0
    %v1110 = vadd.f32 %v986, %v1109
    %v1111 = vpop.f32.mrf.mxu0
    %v1112 = vadd.f32 %v986, %v1111
    %1113 = vmatmul.bf16.gmra.mxu0 %v967
    %v1114 = vpop.f32.mrf.mxu0
    %v1115 = vadd.f32 %v986, %v1114
    %v1116 = vpop.f32.mrf.mxu0
    %v1117 = vadd.f32 %v986, %v1116
    %1118 = vdwg.mxu0
    %1119 = vmatpush.bf16.msra.mxu0 %v1053
    %1120 = vmatpush.bf16.msra.mxu0 %v1051
    %1121 = vmatpush.bf16.msra.mxu0 %v1049
    %1122 = vmatpush.bf16.msra.mxu0 %v1047
    %1123 = vmatpush.bf16.msra.mxu0 %v1045
    %1124 = vmatpush.bf16.msra.mxu0 %v1043
    %1125 = vmatpush.bf16.msra.mxu0 %v1041
    %1126 = vmatpush.bf16.msra.mxu0 %v1039
    %1127 = vmatmul.bf16.gmra.mxu0 %v960
    %v1128 = vpop.f32.mrf.mxu0
    %v1129 = vadd.f32 %v987, %v1128
    %v1130 = vpop.f32.mrf.mxu0
    %v1131 = vadd.f32 %v987, %v1130
    %1132 = vmatmul.bf16.gmra.mxu0 %v961
    %v1133 = vpop.f32.mrf.mxu0
    %v1134 = vadd.f32 %v987, %v1133
    %v1135 = vpop.f32.mrf.mxu0
    %v1136 = vadd.f32 %v987, %v1135
    %1137 = vmatmul.bf16.gmra.mxu0 %v962
    %v1138 = vpop.f32.mrf.mxu0
    %v1139 = vadd.f32 %v987, %v1138
    %v1140 = vpop.f32.mrf.mxu0
    %v1141 = vadd.f32 %v987, %v1140
    %1142 = vmatmul.bf16.gmra.mxu0 %v963
    %v1143 = vpop.f32.mrf.mxu0
    %v1144 = vadd.f32 %v987, %v1143
    %v1145 = vpop.f32.mrf.mxu0
    %v1146 = vadd.f32 %v987, %v1145
    %1147 = vmatmul.bf16.gmra.mxu0 %v964
    %v1148 = vpop.f32.mrf.mxu0
    %v1149 = vadd.f32 %v987, %v1148
    %v1150 = vpop.f32.mrf.mxu0
    %v1151 = vadd.f32 %v987, %v1150
    %1152 = vmatmul.bf16.gmra.mxu0 %v965
    %v1153 = vpop.f32.mrf.mxu0
    %v1154 = vadd.f32 %v987, %v1153
    %v1155 = vpop.f32.mrf.mxu0
    %v1156 = vadd.f32 %v987, %v1155
    %1157 = vmatmul.bf16.gmra.mxu0 %v966
    %v1158 = vpop.f32.mrf.mxu0
    %v1159 = vadd.f32 %v987, %v1158
    %v1160 = vpop.f32.mrf.mxu0
    %v1161 = vadd.f32 %v987, %v1160
    %1162 = vmatmul.bf16.gmra.mxu0 %v967
    %v1163 = vpop.f32.mrf.mxu0
    %v1164 = vadd.f32 %v987, %v1163
    %v1165 = vpop.f32.mrf.mxu0
    %v1166 = vadd.f32 %v987, %v1165
    %1167 = vdwg.mxu0
    %v1168 = vpack.c.bf16 %v1082, %v1080
    %v1169 = vpack.c.bf16 %v1131, %v1129
    %v1170 = vpack.c.bf16 %v1087, %v1085
    %v1171 = vpack.c.bf16 %v1136, %v1134
    %v1172 = vpack.c.bf16 %v1092, %v1090
    %v1173 = vpack.c.bf16 %v1141, %v1139
    %v1174 = vpack.c.bf16 %v1097, %v1095
    %v1175 = vpack.c.bf16 %v1146, %v1144
    %v1176 = vpack.c.bf16 %v1102, %v1100
    %v1177 = vpack.c.bf16 %v1151, %v1149
    %v1178 = vpack.c.bf16 %v1107, %v1105
    %v1179 = vpack.c.bf16 %v1156, %v1154
    %v1180 = vpack.c.bf16 %v1112, %v1110
    %v1181 = vpack.c.bf16 %v1161, %v1159
    %v1182 = vpack.c.bf16 %v1117, %v1115
    %v1183 = vpack.c.bf16 %v1166, %v1164
    %v1184 = vld [vmem:[%s5] sm:$0xf]
    %v1185 = vld [vmem:[%s5 + $0x4] sm:$0xf]
    %v1186 = vld [vmem:[%s5 + $0x8] sm:$0xf]
    %v1187 = vld [vmem:[%s5 + $0xc] sm:$0xf]
    %v1188 = vld [vmem:[%s5 + $0x10] sm:$0xf]
    %v1189 = vld [vmem:[%s5 + $0x14] sm:$0xf]
    %v1190 = vld [vmem:[%s5 + $0x18] sm:$0xf]
    %v1191 = vld [vmem:[%s5 + $0x1c] sm:$0xf]
    %v1192 = vld [vmem:[%s5 + $0x20] sm:$0xf]
    %v1193 = vld [vmem:[%s5 + $0x24] sm:$0xf]
    %v1194 = vld [vmem:[%s5 + $0x28] sm:$0xf]
    %v1195 = vld [vmem:[%s5 + $0x2c] sm:$0xf]
    %v1196 = vld [vmem:[%s5 + $0x30] sm:$0xf]
    %v1197 = vld [vmem:[%s5 + $0x34] sm:$0xf]
    %v1198 = vld [vmem:[%s5 + $0x38] sm:$0xf]
    %v1199 = vld [vmem:[%s5 + $0x3c] sm:$0xf]
    %v1200 = vld [vmem:[%s5 + $0x40] sm:$0xf]
    %v1201 = vld [vmem:[%s5 + $0x44] sm:$0xf]
    %v1202 = vld [vmem:[%s5 + $0x48] sm:$0xf]
    %v1203 = vld [vmem:[%s5 + $0x4c] sm:$0xf]
    %v1204 = vld [vmem:[%s5 + $0x50] sm:$0xf]
    %v1205 = vld [vmem:[%s5 + $0x54] sm:$0xf]
    %v1206 = vld [vmem:[%s5 + $0x58] sm:$0xf]
    %v1207 = vld [vmem:[%s5 + $0x5c] sm:$0xf]
    %v1208 = vld [vmem:[%s5 + $0x60] sm:$0xf]
    %v1209 = vld [vmem:[%s5 + $0x64] sm:$0xf]
    %v1210 = vld [vmem:[%s5 + $0x68] sm:$0xf]
    %v1211 = vld [vmem:[%s5 + $0x6c] sm:$0xf]
    %v1212 = vld [vmem:[%s5 + $0x70] sm:$0xf]
    %v1213 = vld [vmem:[%s5 + $0x74] sm:$0xf]
    %v1214 = vld [vmem:[%s5 + $0x78] sm:$0xf]
    %v1215 = vld [vmem:[%s5 + $0x7c] sm:$0xf]
    %v1216 = vld [vmem:[%s6] sm:$0x1]
    %v1218 = vperm.slane %v1216, 0
    %v1252 = vunpack.c.l.b16 %v1184
    %v1253 = vunpack.c.l.b16 %v1185
    %v1254 = vunpack.c.l.b16 %v1186
    %v1255 = vunpack.c.l.b16 %v1187
    %v1256 = vunpack.c.l.b16 %v1188
    %v1257 = vunpack.c.l.b16 %v1189
    %v1258 = vunpack.c.l.b16 %v1190
    %v1259 = vunpack.c.l.b16 %v1191
    %v1260 = vunpack.c.l.b16 %v1192
    %v1261 = vunpack.c.l.b16 %v1193
    %v1262 = vunpack.c.l.b16 %v1194
    %v1263 = vunpack.c.l.b16 %v1195
    %v1264 = vunpack.c.l.b16 %v1196
    %v1265 = vunpack.c.l.b16 %v1197
    %v1266 = vunpack.c.l.b16 %v1198
    %v1267 = vunpack.c.l.b16 %v1199
    %v1268 = vunpack.c.l.b16 %v1200
    %v1269 = vunpack.c.l.b16 %v1201
    %v1270 = vunpack.c.l.b16 %v1202
    %v1271 = vunpack.c.l.b16 %v1203
    %v1272 = vunpack.c.l.b16 %v1204
    %v1273 = vunpack.c.l.b16 %v1205
    %v1274 = vunpack.c.l.b16 %v1206
    %v1275 = vunpack.c.l.b16 %v1207
    %v1276 = vunpack.c.l.b16 %v1208
    %v1277 = vunpack.c.l.b16 %v1209
    %v1278 = vunpack.c.l.b16 %v1210
    %v1279 = vunpack.c.l.b16 %v1211
    %v1280 = vunpack.c.l.b16 %v1212
    %v1281 = vunpack.c.l.b16 %v1213
    %v1282 = vunpack.c.l.b16 %v1214
    %v1283 = vunpack.c.l.b16 %v1215
    %v1284 = vpack.c.b16 %v1253, %v1252
    %v1285 = vpack.c.b16 %v1255, %v1254
    %v1286 = vpack.c.b16 %v1257, %v1256
    %v1287 = vpack.c.b16 %v1259, %v1258
    %v1288 = vpack.c.b16 %v1261, %v1260
    %v1289 = vpack.c.b16 %v1263, %v1262
    %v1290 = vpack.c.b16 %v1265, %v1264
    %v1291 = vpack.c.b16 %v1267, %v1266
    %v1292 = vpack.c.b16 %v1269, %v1268
    %v1293 = vpack.c.b16 %v1271, %v1270
    %v1294 = vpack.c.b16 %v1273, %v1272
    %v1295 = vpack.c.b16 %v1275, %v1274
    %v1296 = vpack.c.b16 %v1277, %v1276
    %v1297 = vpack.c.b16 %v1279, %v1278
    %v1298 = vpack.c.b16 %v1281, %v1280
    %v1299 = vpack.c.b16 %v1283, %v1282
    %1316 = vmatpush.bf16.msra.mxu0 %v1291
    %1317 = vmatpush.bf16.msra.mxu0 %v1290
    %1318 = vmatpush.bf16.msra.mxu0 %v1289
    %1319 = vmatpush.bf16.msra.mxu0 %v1288
    %1320 = vmatpush.bf16.msra.mxu0 %v1287
    %1321 = vmatpush.bf16.msra.mxu0 %v1286
    %1322 = vmatpush.bf16.msra.mxu0 %v1285
    %1323 = vmatpush.bf16.msra.mxu0 %v1284
    %1324 = vmatmul.bf16.gmra.mxu0 %v1168
    %v1325 = vpop.f32.mrf.mxu0
    %v1326 = vadd.f32 %v1218, %v1325
    %v1327 = vpop.f32.mrf.mxu0
    %v1328 = vadd.f32 %v1218, %v1327
    %1329 = vmatmul.bf16.gmra.mxu0 %v1170
    %v1330 = vpop.f32.mrf.mxu0
    %v1331 = vadd.f32 %v1218, %v1330
    %v1332 = vpop.f32.mrf.mxu0
    %v1333 = vadd.f32 %v1218, %v1332
    %1334 = vmatmul.bf16.gmra.mxu0 %v1172
    %v1335 = vpop.f32.mrf.mxu0
    %v1336 = vadd.f32 %v1218, %v1335
    %v1337 = vpop.f32.mrf.mxu0
    %v1338 = vadd.f32 %v1218, %v1337
    %1339 = vmatmul.bf16.gmra.mxu0 %v1174
    %v1340 = vpop.f32.mrf.mxu0
    %v1341 = vadd.f32 %v1218, %v1340
    %v1342 = vpop.f32.mrf.mxu0
    %v1343 = vadd.f32 %v1218, %v1342
    %1344 = vmatmul.bf16.gmra.mxu0 %v1176
    %v1345 = vpop.f32.mrf.mxu0
    %v1346 = vadd.f32 %v1218, %v1345
    %v1347 = vpop.f32.mrf.mxu0
    %v1348 = vadd.f32 %v1218, %v1347
    %1349 = vmatmul.bf16.gmra.mxu0 %v1178
    %v1350 = vpop.f32.mrf.mxu0
    %v1351 = vadd.f32 %v1218, %v1350
    %v1352 = vpop.f32.mrf.mxu0
    %v1353 = vadd.f32 %v1218, %v1352
    %1354 = vmatmul.bf16.gmra.mxu0 %v1180
    %v1355 = vpop.f32.mrf.mxu0
    %v1356 = vadd.f32 %v1218, %v1355
    %v1357 = vpop.f32.mrf.mxu0
    %v1358 = vadd.f32 %v1218, %v1357
    %1359 = vmatmul.bf16.gmra.mxu0 %v1182
    %v1360 = vpop.f32.mrf.mxu0
    %v1361 = vadd.f32 %v1218, %v1360
    %v1362 = vpop.f32.mrf.mxu0
    %v1363 = vadd.f32 %v1218, %v1362
    %1364 = vdwg.mxu0
    %1365 = vmatpush.bf16.msra.mxu0 %v1299
    %1366 = vmatpush.bf16.msra.mxu0 %v1298
    %1367 = vmatpush.bf16.msra.mxu0 %v1297
    %1368 = vmatpush.bf16.msra.mxu0 %v1296
    %1369 = vmatpush.bf16.msra.mxu0 %v1295
    %1370 = vmatpush.bf16.msra.mxu0 %v1294
    %1371 = vmatpush.bf16.msra.mxu0 %v1293
    %1372 = vmatpush.bf16.msra.mxu0 %v1292
    %1373 = vmatmul.bf16.gmra.mxu0 %v1169
    %v1374 = vpop.f32.mrf.mxu0
    %v1375 = vadd.f32 %v1326, %v1374
    %v1376 = vpop.f32.mrf.mxu0
    %v1377 = vadd.f32 %v1328, %v1376
    %1378 = vmatmul.bf16.gmra.mxu0 %v1171
    %v1379 = vpop.f32.mrf.mxu0
    %v1380 = vadd.f32 %v1331, %v1379
    %v1381 = vpop.f32.mrf.mxu0
    %v1382 = vadd.f32 %v1333, %v1381
    %1383 = vmatmul.bf16.gmra.mxu0 %v1173
    %v1384 = vpop.f32.mrf.mxu0
    %v1385 = vadd.f32 %v1336, %v1384
    %v1386 = vpop.f32.mrf.mxu0
    %v1387 = vadd.f32 %v1338, %v1386
    %1388 = vmatmul.bf16.gmra.mxu0 %v1175
    %v1389 = vpop.f32.mrf.mxu0
    %v1390 = vadd.f32 %v1341, %v1389
    %v1391 = vpop.f32.mrf.mxu0
    %v1392 = vadd.f32 %v1343, %v1391
    %1393 = vmatmul.bf16.gmra.mxu0 %v1177
    %v1394 = vpop.f32.mrf.mxu0
    %v1395 = vadd.f32 %v1346, %v1394
    %v1396 = vpop.f32.mrf.mxu0
    %v1397 = vadd.f32 %v1348, %v1396
    %1398 = vmatmul.bf16.gmra.mxu0 %v1179
    %v1399 = vpop.f32.mrf.mxu0
    %v1400 = vadd.f32 %v1351, %v1399
    %v1401 = vpop.f32.mrf.mxu0
    %v1402 = vadd.f32 %v1353, %v1401
    %1403 = vmatmul.bf16.gmra.mxu0 %v1181
    %v1404 = vpop.f32.mrf.mxu0
    %v1405 = vadd.f32 %v1356, %v1404
    %v1406 = vpop.f32.mrf.mxu0
    %v1407 = vadd.f32 %v1358, %v1406
    %1408 = vmatmul.bf16.gmra.mxu0 %v1183
    %v1409 = vpop.f32.mrf.mxu0
    %v1410 = vadd.f32 %v1361, %v1409
    %v1411 = vpop.f32.mrf.mxu0
    %v1412 = vadd.f32 %v1363, %v1411
    %1413 = vdwg.mxu0
    %v1414 = vpack.c.bf16 %v1375, %v1375
    %v1415 = vpack.c.bf16 %v1377, %v1377
    %v1416 = vpack.c.bf16 %v1380, %v1380
    %v1417 = vpack.c.bf16 %v1382, %v1382
    %v1418 = vpack.c.bf16 %v1385, %v1385
    %v1419 = vpack.c.bf16 %v1387, %v1387
    %v1420 = vpack.c.bf16 %v1390, %v1390
    %v1421 = vpack.c.bf16 %v1392, %v1392
    %v1422 = vpack.c.bf16 %v1395, %v1395
    %v1423 = vpack.c.bf16 %v1397, %v1397
    %v1424 = vpack.c.bf16 %v1400, %v1400
    %v1425 = vpack.c.bf16 %v1402, %v1402
    %v1426 = vpack.c.bf16 %v1405, %v1405
    %v1427 = vpack.c.bf16 %v1407, %v1407
    %v1428 = vpack.c.bf16 %v1410, %v1410
    %v1429 = vpack.c.bf16 %v1412, %v1412
    %1430 = vst [vmem:[#allocation2] sm:$0xf] %v1414
    %1431 = vst [vmem:[#allocation2 + $0x4] sm:$0xf] %v1415
    %1432 = vst [vmem:[#allocation2 + $0x8] sm:$0xf] %v1416
    %1433 = vst [vmem:[#allocation2 + $0xc] sm:$0xf] %v1417
    %1434 = vst [vmem:[#allocation2 + $0x10] sm:$0xf] %v1418
    %1435 = vst [vmem:[#allocation2 + $0x14] sm:$0xf] %v1419
    %1436 = vst [vmem:[#allocation2 + $0x18] sm:$0xf] %v1420
    %1437 = vst [vmem:[#allocation2 + $0x1c] sm:$0xf] %v1421
    %1438 = vst [vmem:[#allocation2 + $0x20] sm:$0xf] %v1422
    %1439 = vst [vmem:[#allocation2 + $0x24] sm:$0xf] %v1423
    %1440 = vst [vmem:[#allocation2 + $0x28] sm:$0xf] %v1424
    %1441 = vst [vmem:[#allocation2 + $0x2c] sm:$0xf] %v1425
    %1442 = vst [vmem:[#allocation2 + $0x30] sm:$0xf] %v1426
    %1443 = vst [vmem:[#allocation2 + $0x34] sm:$0xf] %v1427
    %1444 = vst [vmem:[#allocation2 + $0x38] sm:$0xf] %v1428
    %1445 = vst [vmem:[#allocation2 + $0x3c] sm:$0xf] %v1429
    // Predicated region
    $region30: #{tpu_custom_call.1} parent=1 // pred_check
      _
    $region31: #{tpu_custom_call.1} parent=1 // pred_check_branch
      %1447 = sbr.rel (0) target = $region33
    $region32: #{tpu_custom_call.1} parent=1 // pred_region
      %1449 = vsyncadd [#allocation3], 0
      %s1450 = sshll.u32 [#allocation2], 4
      %s1451 = int_to_ptr.vmem [resolvable:$true] %s1450
      %s1452 = sshll.u32 %s7, 4
      %s1453 = int_to_ptr.hbm [resolvable:$true] %s1452
      %1458 = dma.vmem_to_hbm [thread:$0]  %s1451, 1024, %s1453, [#allocation3], 64, 64, 4
    $region33: #{tpu_custom_call.1} parent=1 // pred_fallthru
      _
    // Predicated region
    $region34: #{tpu_custom_call.1} parent=1 // pred_check
      _
    $region35: #{tpu_custom_call.1} parent=1 // pred_check_branch
      %1460 = sbr.rel (0) target = $region37
    $region36: #{tpu_custom_call.1} parent=1 // pred_region
      %1462 = dma.done [#allocation3], 1024
    $region37: #{tpu_custom_call.1} parent=1 // pred_fallthru
      _
    %1463 = vsyncpa [#allocation3], 1

</llo_original>
